<compile_context>
chip_gen: v5e
topology: v5e:2x2
jax: 0.10.0
libtpu: 0.0.40
codegen_flags: <defaults>
</compile_context>

<pallas_src>
import functools
import math

import jax
import jax.numpy as jnp
from jax.experimental import pallas as pl
from jax.experimental.pallas import tpu as pltpu

EPS = 1e-5


# ------------------------------- kernel --------------------------------------
def _encoder_block_kernel(x_ref, mask_ref,
                          ln1_g_ref, ln1_b_ref,
                          wq_ref, bq_ref, wk_ref, bk_ref, wv_ref, bv_ref,
                          wo_ref, bo_ref,
                          ln2_g_ref, ln2_b_ref,
                          w1_ref, b1_ref, w2_ref, b2_ref,
                          o_ref, *, num_heads, dk, scale):
    """Whole encoder block for one batch element, entirely in VMEM."""
    S = x_ref.shape[1]
    D = num_heads * dk

    x = x_ref[0].astype(jnp.float32)                      # (S, D)

    # ---- sublayer 1: x + MHA(LN1(x)) ----
    mean = jnp.mean(x, axis=-1, keepdims=True)
    var = jnp.mean(jnp.square(x - mean), axis=-1, keepdims=True)
    xn = (x - mean) * jax.lax.rsqrt(var + EPS)
    xn = xn * ln1_g_ref[...] + ln1_b_ref[...]

    # QKV projections; fold 1/sqrt(dk) into q (one (S,D) multiply).
    q = (jnp.dot(xn, wq_ref[...], preferred_element_type=jnp.float32)
         + bq_ref[...]) * scale
    k = jnp.dot(xn, wk_ref[...], preferred_element_type=jnp.float32) + bk_ref[...]
    v = jnp.dot(xn, wv_ref[...], preferred_element_type=jnp.float32) + bv_ref[...]

    # (S, D) -> (H, S, dk): batched dots over heads, no per-head lane slicing.
    qh = jnp.swapaxes(q.reshape(S, num_heads, dk), 0, 1)
    kh = jnp.swapaxes(k.reshape(S, num_heads, dk), 0, 1)
    vh = jnp.swapaxes(v.reshape(S, num_heads, dk), 0, 1)

    # Scores: one batched dot_general (contract dk, batch over heads).
    s = jnp.einsum('hqd,hkd->hqk', qh, kh,
                   preferred_element_type=jnp.float32)    # (H, S, S)

    keep = mask_ref[0, 0] != 0.0                          # (S, S), compared once
    s = jnp.where(keep[None, :, :], s, -1e9)

    # Numerically-stable softmax; reciprocal goes to the EUP slot.
    s = s - jnp.max(s, axis=-1, keepdims=True)
    p = jnp.exp(s)
    denom = jnp.sum(p, axis=-1, keepdims=True)
    p = p * pl.reciprocal(denom, approx=False)

    attn_h = jnp.einsum('hqk,hkd->hqd', p, vh,
                        preferred_element_type=jnp.float32)  # (H, S, dk)
    attn = jnp.swapaxes(attn_h, 0, 1).reshape(S, D)          # (S, D)

    y = jnp.dot(attn, wo_ref[...], preferred_element_type=jnp.float32) + bo_ref[...]
    x1 = x + y                                            # residual 1

    # ---- sublayer 2: x + FFN(LN2(x)) ----
    mean2 = jnp.mean(x1, axis=-1, keepdims=True)
    var2 = jnp.mean(jnp.square(x1 - mean2), axis=-1, keepdims=True)
    xn2 = (x1 - mean2) * jax.lax.rsqrt(var2 + EPS)
    xn2 = xn2 * ln2_g_ref[...] + ln2_b_ref[...]

    h = jnp.dot(xn2, w1_ref[...], preferred_element_type=jnp.float32) + b1_ref[...]
    h = jnp.maximum(h, 0.0)
    y2 = jnp.dot(h, w2_ref[...], preferred_element_type=jnp.float32) + b2_ref[...]

    o_ref[0] = (x1 + y2).astype(o_ref.dtype)              # residual 2


# ------------------------------- wrapper --------------------------------------
def encoder_block_forward(x, src_mask, params):
    """x: (B, S, D), src_mask: (B, 1, S, S).  Dropout = identity (eval mode)."""
    B, S, D = x.shape
    H = params["num_heads"]
    dk = D // H
    DFF = params["w1"].shape[1]

    kernel = functools.partial(_encoder_block_kernel, num_heads=H, dk=dk,
                               scale=1.0 / math.sqrt(dk))

    resident2 = lambda shape: pl.BlockSpec(shape, lambda b: (0, 0))

    return pl.pallas_call(
        kernel,
        out_shape=jax.ShapeDtypeStruct((B, S, D), x.dtype),
        grid=(B,),
        in_specs=[
            pl.BlockSpec((1, S, D), lambda b: (b, 0, 0)),        # x
            pl.BlockSpec((1, 1, S, S), lambda b: (b, 0, 0, 0)),  # mask
            resident2((1, D)),   # ln1_g
            resident2((1, D)),   # ln1_b
            resident2((D, D)),   # wq
            resident2((1, D)),   # bq
            resident2((D, D)),   # wk
            resident2((1, D)),   # bk
            resident2((D, D)),   # wv
            resident2((1, D)),   # bv
            resident2((D, D)),   # wo
            resident2((1, D)),   # bo
            resident2((1, D)),   # ln2_g
            resident2((1, D)),   # ln2_b
            resident2((D, DFF)),  # w1
            resident2((1, DFF)),  # b1
            resident2((DFF, D)),  # w2
            resident2((1, D)),    # b2
        ],
        out_specs=pl.BlockSpec((1, S, D), lambda b: (b, 0, 0)),
        compiler_params=pltpu.CompilerParams(
            dimension_semantics=("parallel",)),
    )(x, src_mask,
      params["ln1_g"].reshape(1, D), params["ln1_b"].reshape(1, D),
      params["wq"], params["bq"].reshape(1, D),
      params["wk"], params["bk"].reshape(1, D),
      params["wv"], params["bv"].reshape(1, D),
      params["wo"], params["bo"].reshape(1, D),
      params["ln2_g"].reshape(1, D), params["ln2_b"].reshape(1, D),
      params["w1"], params["b1"].reshape(1, DFF),
      params["w2"], params["b2"].reshape(1, D))


# --------------------------- pure-JAX reference --------------------------------
def reference_forward(x, src_mask, params):
    B, S, D = x.shape
    H = params["num_heads"]
    dk = D // H

    def ln(t, g, b):
        mu = t.mean(-1, keepdims=True)
        var = ((t - mu) ** 2).mean(-1, keepdims=True)
        return (t - mu) / jnp.sqrt(var + EPS) * g + b

    xn = ln(x, params["ln1_g"], params["ln1_b"])
    q = (xn @ params["wq"] + params["bq"]).reshape(B, S, H, dk).transpose(0, 2, 1, 3)
    k = (xn @ params["wk"] + params["bk"]).reshape(B, S, H, dk).transpose(0, 2, 1, 3)
    v = (xn @ params["wv"] + params["bv"]).reshape(B, S, H, dk).transpose(0, 2, 1, 3)
    s = jnp.einsum("bhqd,bhkd->bhqk", q, k) / math.sqrt(dk)
    s = jnp.where(src_mask == 0, -1e9, s)
    p = jax.nn.softmax(s, axis=-1)
    a = jnp.einsum("bhqk,bhkd->bhqd", p, v).transpose(0, 2, 1, 3).reshape(B, S, D)
    x = x + (a @ params["wo"] + params["bo"])

    xn = ln(x, params["ln2_g"], params["ln2_b"])
    h = jnp.maximum(xn @ params["w1"] + params["b1"], 0.0)
    x = x + (h @ params["w2"] + params["b2"])
    return x


# --------------------------------- main ----------------------------------------
if __name__ == "__main__":
    B, S, D, H, DFF = 2, 8, 32, 4, 64

    key = jax.random.PRNGKey(0)
    ks = jax.random.split(key, 16)
    scale = 0.05
    params = {
        "num_heads": H,
        "ln1_g": jnp.ones((D,), jnp.float32),
        "ln1_b": jnp.zeros((D,), jnp.float32),
        "ln2_g": jnp.ones((D,), jnp.float32),
        "ln2_b": jnp.zeros((D,), jnp.float32),
        "wq": scale * jax.random.normal(ks[0], (D, D), jnp.float32),
        "bq": scale * jax.random.normal(ks[1], (D,), jnp.float32),
        "wk": scale * jax.random.normal(ks[2], (D, D), jnp.float32),
        "bk": scale * jax.random.normal(ks[3], (D,), jnp.float32),
        "wv": scale * jax.random.normal(ks[4], (D, D), jnp.float32),
        "bv": scale * jax.random.normal(ks[5], (D,), jnp.float32),
        "wo": scale * jax.random.normal(ks[6], (D, D), jnp.float32),
        "bo": scale * jax.random.normal(ks[7], (D,), jnp.float32),
        "w1": scale * jax.random.normal(ks[8], (D, DFF), jnp.float32),
        "b1": scale * jax.random.normal(ks[9], (DFF,), jnp.float32),
        "w2": scale * jax.random.normal(ks[10], (DFF, D), jnp.float32),
        "b2": scale * jax.random.normal(ks[11], (D,), jnp.float32),
    }

    x = jax.random.normal(ks[12], (B, S, D), jnp.float32)
    # src_mask: 1 = attend, 0 = masked.  Batch 1 has the last two positions padded.
    mask = jnp.ones((B, 1, S, S), jnp.float32)
    mask = mask.at[1, :, :, S - 2:].set(0.0)

    out = encoder_block_forward(x, mask, params)
    out = jax.block_until_ready(out)

    ref = reference_forward(x, mask, params)
    assert out.shape == (B, S, D)
    assert jnp.allclose(out, ref, atol=1e-4, rtol=1e-4), "mismatch vs reference"

    print("KERNEL_OK")
</pallas_src>

<mosaic_0001>
module attributes {stable_mosaic.version = 11 : i64} {
  func.func @_encoder_block_kernel(%arg0: i32, %arg1: memref<1x8x32xf32, #tpu.memory_space<vmem>>, %arg2: memref<1x1x8x8xf32, #tpu.memory_space<vmem>>, %arg3: memref<1x32xf32, #tpu.memory_space<vmem>>, %arg4: memref<1x32xf32, #tpu.memory_space<vmem>>, %arg5: memref<32x32xf32, #tpu.memory_space<vmem>>, %arg6: memref<1x32xf32, #tpu.memory_space<vmem>>, %arg7: memref<32x32xf32, #tpu.memory_space<vmem>>, %arg8: memref<1x32xf32, #tpu.memory_space<vmem>>, %arg9: memref<32x32xf32, #tpu.memory_space<vmem>>, %arg10: memref<1x32xf32, #tpu.memory_space<vmem>>, %arg11: memref<32x32xf32, #tpu.memory_space<vmem>>, %arg12: memref<1x32xf32, #tpu.memory_space<vmem>>, %arg13: memref<1x32xf32, #tpu.memory_space<vmem>>, %arg14: memref<1x32xf32, #tpu.memory_space<vmem>>, %arg15: memref<32x64xf32, #tpu.memory_space<vmem>>, %arg16: memref<1x64xf32, #tpu.memory_space<vmem>>, %arg17: memref<64x32xf32, #tpu.memory_space<vmem>>, %arg18: memref<1x32xf32, #tpu.memory_space<vmem>>, %arg19: memref<1x8x32xf32, #tpu.memory_space<vmem>>) attributes {dimension_semantics = [#tpu.dimension_semantics<parallel>], iteration_bounds = array<i64: 2>, scalar_prefetch = 0 : i64, scratch_operands = 0 : i64, tpu.core_type = #tpu.core_type<tc>, window_params = [{transform_indices = @transform_0, window_bounds = array<i64: 1, 8, 32>}, {transform_indices = @transform_1, window_bounds = array<i64: 1, 1, 8, 8>}, {pipeline_mode = #tpu.pipeline_mode<synchronous>, transform_indices = @transform_2, window_bounds = array<i64: 1, 32>}, {pipeline_mode = #tpu.pipeline_mode<synchronous>, transform_indices = @transform_3, window_bounds = array<i64: 1, 32>}, {pipeline_mode = #tpu.pipeline_mode<synchronous>, transform_indices = @transform_4, window_bounds = array<i64: 32, 32>}, {pipeline_mode = #tpu.pipeline_mode<synchronous>, transform_indices = @transform_5, window_bounds = array<i64: 1, 32>}, {pipeline_mode = #tpu.pipeline_mode<synchronous>, transform_indices = @transform_6, window_bounds = array<i64: 32, 32>}, {pipeline_mode = #tpu.pipeline_mode<synchronous>, transform_indices = @transform_7, window_bounds = array<i64: 1, 32>}, {pipeline_mode = #tpu.pipeline_mode<synchronous>, transform_indices = @transform_8, window_bounds = array<i64: 32, 32>}, {pipeline_mode = #tpu.pipeline_mode<synchronous>, transform_indices = @transform_9, window_bounds = array<i64: 1, 32>}, {pipeline_mode = #tpu.pipeline_mode<synchronous>, transform_indices = @transform_10, window_bounds = array<i64: 32, 32>}, {pipeline_mode = #tpu.pipeline_mode<synchronous>, transform_indices = @transform_11, window_bounds = array<i64: 1, 32>}, {pipeline_mode = #tpu.pipeline_mode<synchronous>, transform_indices = @transform_12, window_bounds = array<i64: 1, 32>}, {pipeline_mode = #tpu.pipeline_mode<synchronous>, transform_indices = @transform_13, window_bounds = array<i64: 1, 32>}, {pipeline_mode = #tpu.pipeline_mode<synchronous>, transform_indices = @transform_14, window_bounds = array<i64: 32, 64>}, {pipeline_mode = #tpu.pipeline_mode<synchronous>, transform_indices = @transform_15, window_bounds = array<i64: 1, 64>}, {pipeline_mode = #tpu.pipeline_mode<synchronous>, transform_indices = @transform_16, window_bounds = array<i64: 64, 32>}, {pipeline_mode = #tpu.pipeline_mode<synchronous>, transform_indices = @transform_17, window_bounds = array<i64: 1, 32>}, {transform_indices = @transform_18, window_bounds = array<i64: 1, 8, 32>}]} {
    %c0 = arith.constant 0 : index
    %c0_0 = arith.constant 0 : index
    %c0_1 = arith.constant 0 : index
    %0 = vector.load %arg1[%c0, %c0_0, %c0_1] : memref<1x8x32xf32, #tpu.memory_space<vmem>>, vector<1x8x32xf32>
    %1 = vector.shape_cast %0 : vector<1x8x32xf32> to vector<8x32xf32>
    %cst = arith.constant dense<0.000000e+00> : vector<8xf32>
    %2 = vector.multi_reduction <add>, %1, %cst [1] : vector<8x32xf32> to vector<8xf32>
    %3 = vector.shape_cast %2 : vector<8xf32> to vector<8x1xf32>
    %cst_2 = arith.constant 3.200000e+01 : f32
    %4 = vector.broadcast %cst_2 : f32 to vector<8x1xf32>
    %5 = arith.divf %3, %4 : vector<8x1xf32>
    %6 = vector.broadcast %5 : vector<8x1xf32> to vector<8x32xf32>
    %7 = arith.subf %1, %6 : vector<8x32xf32>
    %8 = arith.mulf %7, %7 : vector<8x32xf32>
    %cst_3 = arith.constant dense<0.000000e+00> : vector<8xf32>
    %9 = vector.multi_reduction <add>, %8, %cst_3 [1] : vector<8x32xf32> to vector<8xf32>
    %10 = vector.shape_cast %9 : vector<8xf32> to vector<8x1xf32>
    %cst_4 = arith.constant 3.200000e+01 : f32
    %11 = vector.broadcast %cst_4 : f32 to vector<8x1xf32>
    %12 = arith.divf %10, %11 : vector<8x1xf32>
    %13 = vector.broadcast %5 : vector<8x1xf32> to vector<8x32xf32>
    %14 = arith.subf %1, %13 : vector<8x32xf32>
    %cst_5 = arith.constant 9.99999974E-6 : f32
    %15 = vector.broadcast %cst_5 : f32 to vector<8x1xf32>
    %16 = arith.addf %12, %15 : vector<8x1xf32>
    %17 = math.rsqrt %16 : vector<8x1xf32>
    %18 = vector.broadcast %17 : vector<8x1xf32> to vector<8x32xf32>
    %19 = arith.mulf %14, %18 : vector<8x32xf32>
    %c0_6 = arith.constant 0 : index
    %c0_7 = arith.constant 0 : index
    %20 = vector.load %arg3[%c0_6, %c0_7] : memref<1x32xf32, #tpu.memory_space<vmem>>, vector<1x32xf32>
    %21 = vector.broadcast %20 : vector<1x32xf32> to vector<8x32xf32>
    %22 = arith.mulf %19, %21 : vector<8x32xf32>
    %c0_8 = arith.constant 0 : index
    %c0_9 = arith.constant 0 : index
    %23 = vector.load %arg4[%c0_8, %c0_9] : memref<1x32xf32, #tpu.memory_space<vmem>>, vector<1x32xf32>
    %24 = vector.broadcast %23 : vector<1x32xf32> to vector<8x32xf32>
    %25 = arith.addf %22, %24 : vector<8x32xf32>
    %c0_10 = arith.constant 0 : index
    %c0_11 = arith.constant 0 : index
    %26 = vector.load %arg5[%c0_10, %c0_11] : memref<32x32xf32, #tpu.memory_space<vmem>>, vector<32x32xf32>
    %cst_12 = arith.constant dense<0.000000e+00> : vector<8x32xf32>
    %27 = tpu.matmul %25, %26, %cst_12 {dimension_numbers = #tpu.dot_dimension_numbers<[1], [0], [0], [1], [0, 0, 1, 1], [], []>} : vector<8x32xf32>, vector<32x32xf32>, vector<8x32xf32> -> vector<8x32xf32>
    %c0_13 = arith.constant 0 : index
    %c0_14 = arith.constant 0 : index
    %28 = vector.load %arg6[%c0_13, %c0_14] : memref<1x32xf32, #tpu.memory_space<vmem>>, vector<1x32xf32>
    %29 = vector.broadcast %28 : vector<1x32xf32> to vector<8x32xf32>
    %30 = arith.addf %27, %29 : vector<8x32xf32>
    %cst_15 = arith.constant 0.353553385 : f32
    %31 = vector.broadcast %cst_15 : f32 to vector<8x32xf32>
    %32 = arith.mulf %30, %31 : vector<8x32xf32>
    %c0_16 = arith.constant 0 : index
    %c0_17 = arith.constant 0 : index
    %33 = vector.load %arg7[%c0_16, %c0_17] : memref<32x32xf32, #tpu.memory_space<vmem>>, vector<32x32xf32>
    %cst_18 = arith.constant dense<0.000000e+00> : vector<8x32xf32>
    %34 = tpu.matmul %25, %33, %cst_18 {dimension_numbers = #tpu.dot_dimension_numbers<[1], [0], [0], [1], [0, 0, 1, 1], [], []>} : vector<8x32xf32>, vector<32x32xf32>, vector<8x32xf32> -> vector<8x32xf32>
    %c0_19 = arith.constant 0 : index
    %c0_20 = arith.constant 0 : index
    %35 = vector.load %arg8[%c0_19, %c0_20] : memref<1x32xf32, #tpu.memory_space<vmem>>, vector<1x32xf32>
    %36 = vector.broadcast %35 : vector<1x32xf32> to vector<8x32xf32>
    %37 = arith.addf %34, %36 : vector<8x32xf32>
    %c0_21 = arith.constant 0 : index
    %c0_22 = arith.constant 0 : index
    %38 = vector.load %arg9[%c0_21, %c0_22] : memref<32x32xf32, #tpu.memory_space<vmem>>, vector<32x32xf32>
    %cst_23 = arith.constant dense<0.000000e+00> : vector<8x32xf32>
    %39 = tpu.matmul %25, %38, %cst_23 {dimension_numbers = #tpu.dot_dimension_numbers<[1], [0], [0], [1], [0, 0, 1, 1], [], []>} : vector<8x32xf32>, vector<32x32xf32>, vector<8x32xf32> -> vector<8x32xf32>
    %c0_24 = arith.constant 0 : index
    %c0_25 = arith.constant 0 : index
    %40 = vector.load %arg10[%c0_24, %c0_25] : memref<1x32xf32, #tpu.memory_space<vmem>>, vector<1x32xf32>
    %41 = vector.broadcast %40 : vector<1x32xf32> to vector<8x32xf32>
    %42 = arith.addf %39, %41 : vector<8x32xf32>
    %43 = vector.shape_cast %32 : vector<8x32xf32> to vector<8x4x8xf32>
    %44 = tpu.transpose %43, [1, 0, 2] : vector<8x4x8xf32> -> vector<4x8x8xf32>
    %45 = vector.shape_cast %37 : vector<8x32xf32> to vector<8x4x8xf32>
    %46 = tpu.transpose %45, [1, 0, 2] : vector<8x4x8xf32> -> vector<4x8x8xf32>
    %47 = vector.shape_cast %42 : vector<8x32xf32> to vector<8x4x8xf32>
    %48 = tpu.transpose %47, [1, 0, 2] : vector<8x4x8xf32> -> vector<4x8x8xf32>
    "tpu.trace_start"() <{level = 10 : i32, message = "hqd,hkd->hqk"}> : () -> ()
    %cst_26 = arith.constant dense<0.000000e+00> : vector<4x8x8xf32>
    %49 = tpu.matmul %44, %46, %cst_26 {dimension_numbers = #tpu.dot_dimension_numbers<[2], [2], [1], [1], [0, 0, 0, 1, 1, 1], [0], [0]>} : vector<4x8x8xf32>, vector<4x8x8xf32>, vector<4x8x8xf32> -> vector<4x8x8xf32>
    "tpu.trace_stop"() : () -> ()
    %c0_27 = arith.constant 0 : index
    %c0_28 = arith.constant 0 : index
    %c0_29 = arith.constant 0 : index
    %c0_30 = arith.constant 0 : index
    %50 = vector.load %arg2[%c0_27, %c0_28, %c0_29, %c0_30] : memref<1x1x8x8xf32, #tpu.memory_space<vmem>>, vector<1x1x8x8xf32>
    %51 = vector.shape_cast %50 : vector<1x1x8x8xf32> to vector<8x8xf32>
    %cst_31 = arith.constant 0.000000e+00 : f32
    %52 = vector.broadcast %cst_31 : f32 to vector<8x8xf32>
    %53 = arith.cmpf one, %51, %52 : vector<8x8xf32>
    %54 = vector.shape_cast %53 : vector<8x8xi1> to vector<1x8x8xi1>
    %cst_32 = arith.constant -1.000000e+09 : f32
    %55 = vector.shape_cast %54 : vector<1x8x8xi1> to vector<1x8x8xi1>
    %56 = vector.broadcast %55 : vector<1x8x8xi1> to vector<4x8x8xi1>
    %57 = vector.broadcast %cst_32 : f32 to vector<4x8x8xf32>
    %58 = arith.select %56, %49, %57 : vector<4x8x8xi1>, vector<4x8x8xf32>
    %cst_33 = arith.constant dense<0xFF800000> : vector<4x8xf32>
    %59 = vector.multi_reduction <maximumf>, %58, %cst_33 [2] : vector<4x8x8xf32> to vector<4x8xf32>
    %60 = vector.shape_cast %59 : vector<4x8xf32> to vector<4x8x1xf32>
    %61 = vector.broadcast %60 : vector<4x8x1xf32> to vector<4x8x8xf32>
    %62 = arith.subf %58, %61 : vector<4x8x8xf32>
    %63 = math.exp %62 : vector<4x8x8xf32>
    %cst_34 = arith.constant dense<0.000000e+00> : vector<4x8xf32>
    %64 = vector.multi_reduction <add>, %63, %cst_34 [2] : vector<4x8x8xf32> to vector<4x8xf32>
    %65 = vector.shape_cast %64 : vector<4x8xf32> to vector<4x8x1xf32>
    %66 = tpu.reciprocal %65 : vector<4x8x1xf32> -> vector<4x8x1xf32>
    %67 = vector.broadcast %66 : vector<4x8x1xf32> to vector<4x8x8xf32>
    %68 = arith.mulf %63, %67 : vector<4x8x8xf32>
    "tpu.trace_start"() <{level = 10 : i32, message = "hqk,hkd->hqd"}> : () -> ()
    %cst_35 = arith.constant dense<0.000000e+00> : vector<4x8x8xf32>
    %69 = tpu.matmul %68, %48, %cst_35 {dimension_numbers = #tpu.dot_dimension_numbers<[2], [1], [1], [2], [0, 0, 0, 1, 1, 2], [0], [0]>} : vector<4x8x8xf32>, vector<4x8x8xf32>, vector<4x8x8xf32> -> vector<4x8x8xf32>
    "tpu.trace_stop"() : () -> ()
    %70 = tpu.transpose %69, [1, 0, 2] : vector<4x8x8xf32> -> vector<8x4x8xf32>
    %71 = vector.shape_cast %70 : vector<8x4x8xf32> to vector<8x32xf32>
    %c0_36 = arith.constant 0 : index
    %c0_37 = arith.constant 0 : index
    %72 = vector.load %arg11[%c0_36, %c0_37] : memref<32x32xf32, #tpu.memory_space<vmem>>, vector<32x32xf32>
    %cst_38 = arith.constant dense<0.000000e+00> : vector<8x32xf32>
    %73 = tpu.matmul %71, %72, %cst_38 {dimension_numbers = #tpu.dot_dimension_numbers<[1], [0], [0], [1], [0, 0, 1, 1], [], []>} : vector<8x32xf32>, vector<32x32xf32>, vector<8x32xf32> -> vector<8x32xf32>
    %c0_39 = arith.constant 0 : index
    %c0_40 = arith.constant 0 : index
    %74 = vector.load %arg12[%c0_39, %c0_40] : memref<1x32xf32, #tpu.memory_space<vmem>>, vector<1x32xf32>
    %75 = vector.broadcast %74 : vector<1x32xf32> to vector<8x32xf32>
    %76 = arith.addf %73, %75 : vector<8x32xf32>
    %77 = arith.addf %1, %76 : vector<8x32xf32>
    %cst_41 = arith.constant dense<0.000000e+00> : vector<8xf32>
    %78 = vector.multi_reduction <add>, %77, %cst_41 [1] : vector<8x32xf32> to vector<8xf32>
    %79 = vector.shape_cast %78 : vector<8xf32> to vector<8x1xf32>
    %cst_42 = arith.constant 3.200000e+01 : f32
    %80 = vector.broadcast %cst_42 : f32 to vector<8x1xf32>
    %81 = arith.divf %79, %80 : vector<8x1xf32>
    %82 = vector.broadcast %81 : vector<8x1xf32> to vector<8x32xf32>
    %83 = arith.subf %77, %82 : vector<8x32xf32>
    %84 = arith.mulf %83, %83 : vector<8x32xf32>
    %cst_43 = arith.constant dense<0.000000e+00> : vector<8xf32>
    %85 = vector.multi_reduction <add>, %84, %cst_43 [1] : vector<8x32xf32> to vector<8xf32>
    %86 = vector.shape_cast %85 : vector<8xf32> to vector<8x1xf32>
    %cst_44 = arith.constant 3.200000e+01 : f32
    %87 = vector.broadcast %cst_44 : f32 to vector<8x1xf32>
    %88 = arith.divf %86, %87 : vector<8x1xf32>
    %89 = vector.broadcast %81 : vector<8x1xf32> to vector<8x32xf32>
    %90 = arith.subf %77, %89 : vector<8x32xf32>
    %cst_45 = arith.constant 9.99999974E-6 : f32
    %91 = vector.broadcast %cst_45 : f32 to vector<8x1xf32>
    %92 = arith.addf %88, %91 : vector<8x1xf32>
    %93 = math.rsqrt %92 : vector<8x1xf32>
    %94 = vector.broadcast %93 : vector<8x1xf32> to vector<8x32xf32>
    %95 = arith.mulf %90, %94 : vector<8x32xf32>
    %c0_46 = arith.constant 0 : index
    %c0_47 = arith.constant 0 : index
    %96 = vector.load %arg13[%c0_46, %c0_47] : memref<1x32xf32, #tpu.memory_space<vmem>>, vector<1x32xf32>
    %97 = vector.broadcast %96 : vector<1x32xf32> to vector<8x32xf32>
    %98 = arith.mulf %95, %97 : vector<8x32xf32>
    %c0_48 = arith.constant 0 : index
    %c0_49 = arith.constant 0 : index
    %99 = vector.load %arg14[%c0_48, %c0_49] : memref<1x32xf32, #tpu.memory_space<vmem>>, vector<1x32xf32>
    %100 = vector.broadcast %99 : vector<1x32xf32> to vector<8x32xf32>
    %101 = arith.addf %98, %100 : vector<8x32xf32>
    %c0_50 = arith.constant 0 : index
    %c0_51 = arith.constant 0 : index
    %102 = vector.load %arg15[%c0_50, %c0_51] : memref<32x64xf32, #tpu.memory_space<vmem>>, vector<32x64xf32>
    %cst_52 = arith.constant dense<0.000000e+00> : vector<8x64xf32>
    %103 = tpu.matmul %101, %102, %cst_52 {dimension_numbers = #tpu.dot_dimension_numbers<[1], [0], [0], [1], [0, 0, 1, 1], [], []>} : vector<8x32xf32>, vector<32x64xf32>, vector<8x64xf32> -> vector<8x64xf32>
    %c0_53 = arith.constant 0 : index
    %c0_54 = arith.constant 0 : index
    %104 = vector.load %arg16[%c0_53, %c0_54] : memref<1x64xf32, #tpu.memory_space<vmem>>, vector<1x64xf32>
    %105 = vector.broadcast %104 : vector<1x64xf32> to vector<8x64xf32>
    %106 = arith.addf %103, %105 : vector<8x64xf32>
    %cst_55 = arith.constant 0.000000e+00 : f32
    %107 = vector.broadcast %cst_55 : f32 to vector<8x64xf32>
    %108 = arith.maximumf %106, %107 : vector<8x64xf32>
    %c0_56 = arith.constant 0 : index
    %c0_57 = arith.constant 0 : index
    %109 = vector.load %arg17[%c0_56, %c0_57] : memref<64x32xf32, #tpu.memory_space<vmem>>, vector<64x32xf32>
    %cst_58 = arith.constant dense<0.000000e+00> : vector<8x32xf32>
    %110 = tpu.matmul %108, %109, %cst_58 {dimension_numbers = #tpu.dot_dimension_numbers<[1], [0], [0], [1], [0, 0, 1, 1], [], []>} : vector<8x64xf32>, vector<64x32xf32>, vector<8x32xf32> -> vector<8x32xf32>
    %c0_59 = arith.constant 0 : index
    %c0_60 = arith.constant 0 : index
    %111 = vector.load %arg18[%c0_59, %c0_60] : memref<1x32xf32, #tpu.memory_space<vmem>>, vector<1x32xf32>
    %112 = vector.broadcast %111 : vector<1x32xf32> to vector<8x32xf32>
    %113 = arith.addf %110, %112 : vector<8x32xf32>
    %114 = arith.addf %77, %113 : vector<8x32xf32>
    %c0_61 = arith.constant 0 : index
    %c0_62 = arith.constant 0 : index
    %c0_63 = arith.constant 0 : index
    %115 = vector.load %arg19[%c0_61, %c0_62, %c0_63] : memref<1x8x32xf32, #tpu.memory_space<vmem>>, vector<1x8x32xf32>
    %116 = vector.shape_cast %115 : vector<1x8x32xf32> to vector<8x32xf32>
    %117 = vector.shape_cast %114 : vector<8x32xf32> to vector<1x8x32xf32>
    tpu.vector_store %arg19[%c0_61, %c0_62, %c0_63], %117 {strides = array<i32>} : memref<1x8x32xf32, #tpu.memory_space<vmem>>, vector<1x8x32xf32>,
    return
  }
  func.func @transform_0(%arg0: i32) -> (i32, i32, i32) {
    %c0_i32 = arith.constant 0 : i32
    %c0_i32_0 = arith.constant 0 : i32
    %c0_i32_1 = arith.constant 0 : i32
    return %arg0, %c0_i32, %c0_i32_0 : i32, i32, i32
  }
  func.func @transform_1(%arg0: i32) -> (i32, i32, i32, i32) {
    %c0_i32 = arith.constant 0 : i32
    %c0_i32_0 = arith.constant 0 : i32
    %c0_i32_1 = arith.constant 0 : i32
    %c0_i32_2 = arith.constant 0 : i32
    return %arg0, %c0_i32, %c0_i32_0, %c0_i32_1 : i32, i32, i32, i32
  }
  func.func @transform_2(%arg0: i32) -> (i32, i32) {
    %c0_i32 = arith.constant 0 : i32
    %c0_i32_0 = arith.constant 0 : i32
    %c0_i32_1 = arith.constant 0 : i32
    return %c0_i32, %c0_i32_0 : i32, i32
  }
  func.func @transform_3(%arg0: i32) -> (i32, i32) {
    %c0_i32 = arith.constant 0 : i32
    %c0_i32_0 = arith.constant 0 : i32
    %c0_i32_1 = arith.constant 0 : i32
    return %c0_i32, %c0_i32_0 : i32, i32
  }
  func.func @transform_4(%arg0: i32) -> (i32, i32) {
    %c0_i32 = arith.constant 0 : i32
    %c0_i32_0 = arith.constant 0 : i32
    %c0_i32_1 = arith.constant 0 : i32
    return %c0_i32, %c0_i32_0 : i32, i32
  }
  func.func @transform_5(%arg0: i32) -> (i32, i32) {
    %c0_i32 = arith.constant 0 : i32
    %c0_i32_0 = arith.constant 0 : i32
    %c0_i32_1 = arith.constant 0 : i32
    return %c0_i32, %c0_i32_0 : i32, i32
  }
  func.func @transform_6(%arg0: i32) -> (i32, i32) {
    %c0_i32 = arith.constant 0 : i32
    %c0_i32_0 = arith.constant 0 : i32
    %c0_i32_1 = arith.constant 0 : i32
    return %c0_i32, %c0_i32_0 : i32, i32
  }
  func.func @transform_7(%arg0: i32) -> (i32, i32) {
    %c0_i32 = arith.constant 0 : i32
    %c0_i32_0 = arith.constant 0 : i32
    %c0_i32_1 = arith.constant 0 : i32
    return %c0_i32, %c0_i32_0 : i32, i32
  }
  func.func @transform_8(%arg0: i32) -> (i32, i32) {
    %c0_i32 = arith.constant 0 : i32
    %c0_i32_0 = arith.constant 0 : i32
    %c0_i32_1 = arith.constant 0 : i32
    return %c0_i32, %c0_i32_0 : i32, i32
  }
  func.func @transform_9(%arg0: i32) -> (i32, i32) {
    %c0_i32 = arith.constant 0 : i32
    %c0_i32_0 = arith.constant 0 : i32
    %c0_i32_1 = arith.constant 0 : i32
    return %c0_i32, %c0_i32_0 : i32, i32
  }
  func.func @transform_10(%arg0: i32) -> (i32, i32) {
    %c0_i32 = arith.constant 0 : i32
    %c0_i32_0 = arith.constant 0 : i32
    %c0_i32_1 = arith.constant 0 : i32
    return %c0_i32, %c0_i32_0 : i32, i32
  }
  func.func @transform_11(%arg0: i32) -> (i32, i32) {
    %c0_i32 = arith.constant 0 : i32
    %c0_i32_0 = arith.constant 0 : i32
    %c0_i32_1 = arith.constant 0 : i32
    return %c0_i32, %c0_i32_0 : i32, i32
  }
  func.func @transform_12(%arg0: i32) -> (i32, i32) {
    %c0_i32 = arith.constant 0 : i32
    %c0_i32_0 = arith.constant 0 : i32
    %c0_i32_1 = arith.constant 0 : i32
    return %c0_i32, %c0_i32_0 : i32, i32
  }
  func.func @transform_13(%arg0: i32) -> (i32, i32) {
    %c0_i32 = arith.constant 0 : i32
    %c0_i32_0 = arith.constant 0 : i32
    %c0_i32_1 = arith.constant 0 : i32
    return %c0_i32, %c0_i32_0 : i32, i32
  }
  func.func @transform_14(%arg0: i32) -> (i32, i32) {
    %c0_i32 = arith.constant 0 : i32
    %c0_i32_0 = arith.constant 0 : i32
    %c0_i32_1 = arith.constant 0 : i32
    return %c0_i32, %c0_i32_0 : i32, i32
  }
  func.func @transform_15(%arg0: i32) -> (i32, i32) {
    %c0_i32 = arith.constant 0 : i32
    %c0_i32_0 = arith.constant 0 : i32
    %c0_i32_1 = arith.constant 0 : i32
    return %c0_i32, %c0_i32_0 : i32, i32
  }
  func.func @transform_16(%arg0: i32) -> (i32, i32) {
    %c0_i32 = arith.constant 0 : i32
    %c0_i32_0 = arith.constant 0 : i32
    %c0_i32_1 = arith.constant 0 : i32
    return %c0_i32, %c0_i32_0 : i32, i32
  }
  func.func @transform_17(%arg0: i32) -> (i32, i32) {
    %c0_i32 = arith.constant 0 : i32
    %c0_i32_0 = arith.constant 0 : i32
    %c0_i32_1 = arith.constant 0 : i32
    return %c0_i32, %c0_i32_0 : i32, i32
  }
  func.func @transform_18(%arg0: i32) -> (i32, i32, i32) {
    %c0_i32 = arith.constant 0 : i32
    %c0_i32_0 = arith.constant 0 : i32
    %c0_i32_1 = arith.constant 0 : i32
    return %arg0, %c0_i32, %c0_i32_0 : i32, i32, i32
  }
}

</mosaic_0001>

<llo_original>
// kernel: tpu_custom_call.1
$region0: #{tpu_custom_call.1}
  #allocation0 [shape = 'u32[]', space=smem, size = 0x4, offset = 0x4, fixed_abs, tag = 'smem constant byte address 0x4 - core index']
  #allocation1 [shape = 'u32[72,128]{1,0:T(1,128)}', space=vmem, size = 0x9000, scoped, tag = 'internal scratch']
  %s0 = inlined_call_operand.hbm [shape: f32[2,8,32], index: 0, kind: input, shape index: {}]
  %s1 = inlined_call_operand.hbm [shape: f32[2,1,8,8], index: 1, kind: input, shape index: {}]
  %s2 = inlined_call_operand.vmem [shape: f32[1,32], index: 2, kind: input, shape index: {}]
  %s3 = inlined_call_operand.hbm [shape: f32[1,32], index: 3, kind: input, shape index: {}]
  %s4 = inlined_call_operand.vmem [shape: f32[32,32], index: 4, kind: input, shape index: {}]
  %s5 = inlined_call_operand.vmem [shape: f32[1,32], index: 5, kind: input, shape index: {}]
  %s6 = inlined_call_operand.vmem [shape: f32[32,32], index: 6, kind: input, shape index: {}]
  %s7 = inlined_call_operand.vmem [shape: f32[1,32], index: 7, kind: input, shape index: {}]
  %s8 = inlined_call_operand.vmem [shape: f32[32,32], index: 8, kind: input, shape index: {}]
  %s9 = inlined_call_operand.vmem [shape: f32[1,32], index: 9, kind: input, shape index: {}]
  %s10 = inlined_call_operand.hbm [shape: f32[32,32], index: 10, kind: input, shape index: {}]
  %s11 = inlined_call_operand.vmem [shape: f32[1,32], index: 11, kind: input, shape index: {}]
  %s12 = inlined_call_operand.vmem [shape: f32[1,32], index: 12, kind: input, shape index: {}]
  %s13 = inlined_call_operand.vmem [shape: f32[1,32], index: 13, kind: input, shape index: {}]
  %s14 = inlined_call_operand.hbm [shape: f32[32,64], index: 14, kind: input, shape index: {}]
  %s15 = inlined_call_operand.vmem [shape: f32[1,64], index: 15, kind: input, shape index: {}]
  %s16 = inlined_call_operand.vmem [shape: f32[64,32], index: 16, kind: input, shape index: {}]
  %s17 = inlined_call_operand.vmem [shape: f32[1,32], index: 17, kind: input, shape index: {}]
  %s18 = inlined_call_operand.hbm [shape: f32[2,8,32], index: 18, kind: output, shape index: {}]
  %s19 = sld [smem:[#allocation0]]
  $region125: #{tpu_custom_call.1} parent=0
    _
  %s21 = ssub.s32 1, %s19
  %s22 = scalar_select 0, %s21, %s19
  $region1: #{tpu_custom_call.1} parent=0
    #allocation2 [shape = 'u8[8192]{0}', space=vmem, size = 0x2000, scoped, tag = 'input window, operand 0']
    #allocation3 [shape = 's32[2]{0}', space=sflag, size = 0x8, scoped, tag = 'scoped memory for tpu_custom_call.1']
    #allocation4 [shape = 's32[2]{0}', space=sflag, size = 0x8, scoped, tag = 'scoped memory for tpu_custom_call.1']
    #allocation5 [shape = 'u8[8192]{0}', space=vmem, size = 0x2000, scoped, tag = 'input window, operand 1']
    #allocation6 [shape = 's32[2]{0}', space=sflag, size = 0x8, scoped, tag = 'scoped memory for tpu_custom_call.1']
    #allocation7 [shape = 'u8[512]{0}', space=vmem, size = 0x400, scoped, tag = 'input window, operand 3, single buffered']
    #allocation8 [shape = 'u8[16384]{0}', space=vmem, size = 0x4000, scoped, tag = 'input window, operand 10, single buffered']
    #allocation9 [shape = 's32[1]{0}', space=sflag, size = 0x4, scoped, tag = 'scoped memory for tpu_custom_call.1']
    #allocation10 [shape = 'u8[16384]{0}', space=vmem, size = 0x4000, scoped, tag = 'input window, operand 14, single buffered']
    #allocation11 [shape = 'u8[8192]{0}', space=vmem, size = 0x2000, scoped, tag = 'output window, operand 0']
    %23 = vsyncpa [#allocation3], 0
    %s24 = scalar_lea.sflag [#allocation3], 1
    %25 = vsyncpa %s24, 0
    %26 = vsyncpa [#allocation6], 0
    %s27 = scalar_lea.sflag [#allocation6], 1
    %28 = vsyncpa %s27, 0
    %29 = vsyncpa [#allocation9], 0
    %30 = vsyncpa [#allocation4], 0
    %s31 = scalar_lea.sflag [#allocation4], 1
    %32 = vsyncpa %s31, 0
    loop: start=0, step=1, limit=4
    $region2: #{tpu_custom_call.1} parent=1 // loop_pre_header
      _
    $region3: #{tpu_custom_call.1} parent=1 // loop_header
      %s34 = sphi 0, %s38
      %p35 = scmp.ge.s32.totalorder %s34, 4
      %s44 = sphi 0, %s46
      %s47 = sphi 0, %s44
      %s48 = sphi 0, %s47
      %s64 = sphi 0, %s48
      %s70 = sphi 0, %s72
      %s73 = sphi 0, %s70
      %s74 = sphi 0, %s73
      %s90 = sphi 0, %s74
      %s94 = sphi 0, %s94
      %s96 = sphi 0, %s94
      %s97 = sphi 0, %s96
      %s111 = sphi 0, %s97
      %s115 = sphi 0, %s115
      %s117 = sphi 0, %s115
      %s118 = sphi 0, %s117
      %s132 = sphi 0, %s118
      %s136 = sphi 0, %s136
      %s138 = sphi 0, %s136
      %s139 = sphi 0, %s138
      %s153 = sphi 0, %s139
      %s157 = sphi 0, %s157
      %s159 = sphi 0, %s157
      %s160 = sphi 0, %s159
      %s174 = sphi 0, %s160
      %s178 = sphi 0, %s178
      %s180 = sphi 0, %s178
      %s181 = sphi 0, %s180
      %s195 = sphi 0, %s181
      %s199 = sphi 0, %s199
      %s201 = sphi 0, %s199
      %s202 = sphi 0, %s201
      %s216 = sphi 0, %s202
      %s220 = sphi 0, %s220
      %s222 = sphi 0, %s220
      %s223 = sphi 0, %s222
      %s237 = sphi 0, %s223
      %s241 = sphi 0, %s241
      %s243 = sphi 0, %s241
      %s244 = sphi 0, %s243
      %s258 = sphi 0, %s244
      %s262 = sphi 0, %s262
      %s264 = sphi 0, %s262
      %s265 = sphi 0, %s264
      %s279 = sphi 0, %s265
      %s283 = sphi 0, %s283
      %s285 = sphi 0, %s283
      %s286 = sphi 0, %s285
      %s300 = sphi 0, %s286
      %s304 = sphi 0, %s304
      %s306 = sphi 0, %s304
      %s307 = sphi 0, %s306
      %s321 = sphi 0, %s307
      %s325 = sphi 0, %s325
      %s327 = sphi 0, %s325
      %s328 = sphi 0, %s327
      %s342 = sphi 0, %s328
      %s346 = sphi 0, %s346
      %s348 = sphi 0, %s346
      %s349 = sphi 0, %s348
      %s363 = sphi 0, %s349
      %s367 = sphi 0, %s367
      %s369 = sphi 0, %s367
      %s370 = sphi 0, %s369
      %s384 = sphi 0, %s370
      %s388 = sphi 0, %s388
      %s390 = sphi 0, %s388
      %s391 = sphi 0, %s390
      %s405 = sphi 0, %s391
      %s409 = sphi 0, %s409
      %s411 = sphi 0, %s409
      %s412 = sphi 0, %s411
      %s426 = sphi 0, %s412
      %s432 = sphi 0, %s434
      %s435 = sphi 0, %s432
      %s436 = sphi 0, %s435
      %s452 = sphi 0, %s436
    $region4: #{tpu_custom_call.1} parent=1 // loop_header_branch
      %37 = sbr.rel (%p35) target = $region8
    $region5: #{tpu_custom_call.1} parent=1 // loop_body
      %s39 = ssub.s32 %s34, 1
      %s40 = ssub.s32 %s34, 2
      %s41 = sadd.s32 %s34, 1
      %s42 = ssub.s32 %s34, %s41
      %p43 = scmp.eq.s32.totalorder %s42, 0
      %s45 = sadd.s32 %s44, 1
      %s46 = scalar_select %p43, %s44, %s45
      %p49 = pneg %p43
      %p50 = scmp.eq.s32.totalorder %s34, 1
      %p51 = por %p49, %p50
      %p52 = scmp.ne.s32.totalorder %s44, %s47
      %p53 = scmp.eq.s32.totalorder %s34, 0
      %p54 = por %p52, %p53
      %p55 = scmp.ne.s32.totalorder %s44, %s47
      %p56 = scmp.eq.s32.totalorder %s39, 1
      %p57 = por %p55, %p56
      %p58 = scmp.ne.s32.totalorder %s47, %s48
      %p59 = scmp.eq.s32.totalorder %s39, 0
      %p60 = por %p58, %p59
      %p61 = scmp.ne.s32.totalorder %s47, %s48
      %p62 = scmp.eq.s32.totalorder %s40, 1
      %p63 = por %p61, %p62
      %p65 = scmp.ne.s32.totalorder %s48, %s64
      %p66 = scmp.eq.s32.totalorder %s40, 0
      %p67 = por %p65, %p66
      %s68 = ssub.s32 %s34, %s41
      %p69 = scmp.eq.s32.totalorder %s68, 0
      %s71 = sadd.s32 %s70, 1
      %s72 = scalar_select %p69, %s70, %s71
      %p75 = pneg %p69
      %p76 = scmp.eq.s32.totalorder %s34, 1
      %p77 = por %p75, %p76
      %p78 = scmp.ne.s32.totalorder %s70, %s73
      %p79 = scmp.eq.s32.totalorder %s34, 0
      %p80 = por %p78, %p79
      %p81 = scmp.ne.s32.totalorder %s70, %s73
      %p82 = scmp.eq.s32.totalorder %s39, 1
      %p83 = por %p81, %p82
      %p84 = scmp.ne.s32.totalorder %s73, %s74
      %p85 = scmp.eq.s32.totalorder %s39, 0
      %p86 = por %p84, %p85
      %p87 = scmp.ne.s32.totalorder %s73, %s74
      %p88 = scmp.eq.s32.totalorder %s40, 1
      %p89 = por %p87, %p88
      %p91 = scmp.ne.s32.totalorder %s74, %s90
      %p92 = scmp.eq.s32.totalorder %s40, 0
      %p93 = por %p91, %p92
      %s95 = sadd.s32 %s94, 1
      %p98 = scmp.eq.s32.totalorder %s34, 1
      %p99 = scmp.ne.s32.totalorder %s94, %s96
      %p100 = scmp.eq.s32.totalorder %s34, 0
      %p101 = por %p99, %p100
      %p102 = scmp.ne.s32.totalorder %s94, %s96
      %p103 = scmp.eq.s32.totalorder %s39, 1
      %p104 = por %p102, %p103
      %p105 = scmp.ne.s32.totalorder %s96, %s97
      %p106 = scmp.eq.s32.totalorder %s39, 0
      %p107 = por %p105, %p106
      %p108 = scmp.ne.s32.totalorder %s96, %s97
      %p109 = scmp.eq.s32.totalorder %s40, 1
      %p110 = por %p108, %p109
      %p112 = scmp.ne.s32.totalorder %s97, %s111
      %p113 = scmp.eq.s32.totalorder %s40, 0
      %p114 = por %p112, %p113
      %s116 = sadd.s32 %s115, 1
      %p119 = scmp.eq.s32.totalorder %s34, 1
      %p120 = scmp.ne.s32.totalorder %s115, %s117
      %p121 = scmp.eq.s32.totalorder %s34, 0
      %p122 = por %p120, %p121
      %p123 = scmp.ne.s32.totalorder %s115, %s117
      %p124 = scmp.eq.s32.totalorder %s39, 1
      %p125 = por %p123, %p124
      %p126 = scmp.ne.s32.totalorder %s117, %s118
      %p127 = scmp.eq.s32.totalorder %s39, 0
      %p128 = por %p126, %p127
      %p129 = scmp.ne.s32.totalorder %s117, %s118
      %p130 = scmp.eq.s32.totalorder %s40, 1
      %p131 = por %p129, %p130
      %p133 = scmp.ne.s32.totalorder %s118, %s132
      %p134 = scmp.eq.s32.totalorder %s40, 0
      %p135 = por %p133, %p134
      %s137 = sadd.s32 %s136, 1
      %p140 = scmp.eq.s32.totalorder %s34, 1
      %p141 = scmp.ne.s32.totalorder %s136, %s138
      %p142 = scmp.eq.s32.totalorder %s34, 0
      %p143 = por %p141, %p142
      %p144 = scmp.ne.s32.totalorder %s136, %s138
      %p145 = scmp.eq.s32.totalorder %s39, 1
      %p146 = por %p144, %p145
      %p147 = scmp.ne.s32.totalorder %s138, %s139
      %p148 = scmp.eq.s32.totalorder %s39, 0
      %p149 = por %p147, %p148
      %p150 = scmp.ne.s32.totalorder %s138, %s139
      %p151 = scmp.eq.s32.totalorder %s40, 1
      %p152 = por %p150, %p151
      %p154 = scmp.ne.s32.totalorder %s139, %s153
      %p155 = scmp.eq.s32.totalorder %s40, 0
      %p156 = por %p154, %p155
      %s158 = sadd.s32 %s157, 1
      %p161 = scmp.eq.s32.totalorder %s34, 1
      %p162 = scmp.ne.s32.totalorder %s157, %s159
      %p163 = scmp.eq.s32.totalorder %s34, 0
      %p164 = por %p162, %p163
      %p165 = scmp.ne.s32.totalorder %s157, %s159
      %p166 = scmp.eq.s32.totalorder %s39, 1
      %p167 = por %p165, %p166
      %p168 = scmp.ne.s32.totalorder %s159, %s160
      %p169 = scmp.eq.s32.totalorder %s39, 0
      %p170 = por %p168, %p169
      %p171 = scmp.ne.s32.totalorder %s159, %s160
      %p172 = scmp.eq.s32.totalorder %s40, 1
      %p173 = por %p171, %p172
      %p175 = scmp.ne.s32.totalorder %s160, %s174
      %p176 = scmp.eq.s32.totalorder %s40, 0
      %p177 = por %p175, %p176
      %s179 = sadd.s32 %s178, 1
      %p182 = scmp.eq.s32.totalorder %s34, 1
      %p183 = scmp.ne.s32.totalorder %s178, %s180
      %p184 = scmp.eq.s32.totalorder %s34, 0
      %p185 = por %p183, %p184
      %p186 = scmp.ne.s32.totalorder %s178, %s180
      %p187 = scmp.eq.s32.totalorder %s39, 1
      %p188 = por %p186, %p187
      %p189 = scmp.ne.s32.totalorder %s180, %s181
      %p190 = scmp.eq.s32.totalorder %s39, 0
      %p191 = por %p189, %p190
      %p192 = scmp.ne.s32.totalorder %s180, %s181
      %p193 = scmp.eq.s32.totalorder %s40, 1
      %p194 = por %p192, %p193
      %p196 = scmp.ne.s32.totalorder %s181, %s195
      %p197 = scmp.eq.s32.totalorder %s40, 0
      %p198 = por %p196, %p197
      %s200 = sadd.s32 %s199, 1
      %p203 = scmp.eq.s32.totalorder %s34, 1
      %p204 = scmp.ne.s32.totalorder %s199, %s201
      %p205 = scmp.eq.s32.totalorder %s34, 0
      %p206 = por %p204, %p205
      %p207 = scmp.ne.s32.totalorder %s199, %s201
      %p208 = scmp.eq.s32.totalorder %s39, 1
      %p209 = por %p207, %p208
      %p210 = scmp.ne.s32.totalorder %s201, %s202
      %p211 = scmp.eq.s32.totalorder %s39, 0
      %p212 = por %p210, %p211
      %p213 = scmp.ne.s32.totalorder %s201, %s202
      %p214 = scmp.eq.s32.totalorder %s40, 1
      %p215 = por %p213, %p214
      %p217 = scmp.ne.s32.totalorder %s202, %s216
      %p218 = scmp.eq.s32.totalorder %s40, 0
      %p219 = por %p217, %p218
      %s221 = sadd.s32 %s220, 1
      %p224 = scmp.eq.s32.totalorder %s34, 1
      %p225 = scmp.ne.s32.totalorder %s220, %s222
      %p226 = scmp.eq.s32.totalorder %s34, 0
      %p227 = por %p225, %p226
      %p228 = scmp.ne.s32.totalorder %s220, %s222
      %p229 = scmp.eq.s32.totalorder %s39, 1
      %p230 = por %p228, %p229
      %p231 = scmp.ne.s32.totalorder %s222, %s223
      %p232 = scmp.eq.s32.totalorder %s39, 0
      %p233 = por %p231, %p232
      %p234 = scmp.ne.s32.totalorder %s222, %s223
      %p235 = scmp.eq.s32.totalorder %s40, 1
      %p236 = por %p234, %p235
      %p238 = scmp.ne.s32.totalorder %s223, %s237
      %p239 = scmp.eq.s32.totalorder %s40, 0
      %p240 = por %p238, %p239
      %s242 = sadd.s32 %s241, 1
      %p245 = scmp.eq.s32.totalorder %s34, 1
      %p246 = scmp.ne.s32.totalorder %s241, %s243
      %p247 = scmp.eq.s32.totalorder %s34, 0
      %p248 = por %p246, %p247
      %p249 = scmp.ne.s32.totalorder %s241, %s243
      %p250 = scmp.eq.s32.totalorder %s39, 1
      %p251 = por %p249, %p250
      %p252 = scmp.ne.s32.totalorder %s243, %s244
      %p253 = scmp.eq.s32.totalorder %s39, 0
      %p254 = por %p252, %p253
      %p255 = scmp.ne.s32.totalorder %s243, %s244
      %p256 = scmp.eq.s32.totalorder %s40, 1
      %p257 = por %p255, %p256
      %p259 = scmp.ne.s32.totalorder %s244, %s258
      %p260 = scmp.eq.s32.totalorder %s40, 0
      %p261 = por %p259, %p260
      %s263 = sadd.s32 %s262, 1
      %p266 = scmp.eq.s32.totalorder %s34, 1
      %p267 = scmp.ne.s32.totalorder %s262, %s264
      %p268 = scmp.eq.s32.totalorder %s34, 0
      %p269 = por %p267, %p268
      %p270 = scmp.ne.s32.totalorder %s262, %s264
      %p271 = scmp.eq.s32.totalorder %s39, 1
      %p272 = por %p270, %p271
      %p273 = scmp.ne.s32.totalorder %s264, %s265
      %p274 = scmp.eq.s32.totalorder %s39, 0
      %p275 = por %p273, %p274
      %p276 = scmp.ne.s32.totalorder %s264, %s265
      %p277 = scmp.eq.s32.totalorder %s40, 1
      %p278 = por %p276, %p277
      %p280 = scmp.ne.s32.totalorder %s265, %s279
      %p281 = scmp.eq.s32.totalorder %s40, 0
      %p282 = por %p280, %p281
      %s284 = sadd.s32 %s283, 1
      %p287 = scmp.eq.s32.totalorder %s34, 1
      %p288 = scmp.ne.s32.totalorder %s283, %s285
      %p289 = scmp.eq.s32.totalorder %s34, 0
      %p290 = por %p288, %p289
      %p291 = scmp.ne.s32.totalorder %s283, %s285
      %p292 = scmp.eq.s32.totalorder %s39, 1
      %p293 = por %p291, %p292
      %p294 = scmp.ne.s32.totalorder %s285, %s286
      %p295 = scmp.eq.s32.totalorder %s39, 0
      %p296 = por %p294, %p295
      %p297 = scmp.ne.s32.totalorder %s285, %s286
      %p298 = scmp.eq.s32.totalorder %s40, 1
      %p299 = por %p297, %p298
      %p301 = scmp.ne.s32.totalorder %s286, %s300
      %p302 = scmp.eq.s32.totalorder %s40, 0
      %p303 = por %p301, %p302
      %s305 = sadd.s32 %s304, 1
      %p308 = scmp.eq.s32.totalorder %s34, 1
      %p309 = scmp.ne.s32.totalorder %s304, %s306
      %p310 = scmp.eq.s32.totalorder %s34, 0
      %p311 = por %p309, %p310
      %p312 = scmp.ne.s32.totalorder %s304, %s306
      %p313 = scmp.eq.s32.totalorder %s39, 1
      %p314 = por %p312, %p313
      %p315 = scmp.ne.s32.totalorder %s306, %s307
      %p316 = scmp.eq.s32.totalorder %s39, 0
      %p317 = por %p315, %p316
      %p318 = scmp.ne.s32.totalorder %s306, %s307
      %p319 = scmp.eq.s32.totalorder %s40, 1
      %p320 = por %p318, %p319
      %p322 = scmp.ne.s32.totalorder %s307, %s321
      %p323 = scmp.eq.s32.totalorder %s40, 0
      %p324 = por %p322, %p323
      %s326 = sadd.s32 %s325, 1
      %p329 = scmp.eq.s32.totalorder %s34, 1
      %p330 = scmp.ne.s32.totalorder %s325, %s327
      %p331 = scmp.eq.s32.totalorder %s34, 0
      %p332 = por %p330, %p331
      %p333 = scmp.ne.s32.totalorder %s325, %s327
      %p334 = scmp.eq.s32.totalorder %s39, 1
      %p335 = por %p333, %p334
      %p336 = scmp.ne.s32.totalorder %s327, %s328
      %p337 = scmp.eq.s32.totalorder %s39, 0
      %p338 = por %p336, %p337
      %p339 = scmp.ne.s32.totalorder %s327, %s328
      %p340 = scmp.eq.s32.totalorder %s40, 1
      %p341 = por %p339, %p340
      %p343 = scmp.ne.s32.totalorder %s328, %s342
      %p344 = scmp.eq.s32.totalorder %s40, 0
      %p345 = por %p343, %p344
      %s347 = sadd.s32 %s346, 1
      %p350 = scmp.eq.s32.totalorder %s34, 1
      %p351 = scmp.ne.s32.totalorder %s346, %s348
      %p352 = scmp.eq.s32.totalorder %s34, 0
      %p353 = por %p351, %p352
      %p354 = scmp.ne.s32.totalorder %s346, %s348
      %p355 = scmp.eq.s32.totalorder %s39, 1
      %p356 = por %p354, %p355
      %p357 = scmp.ne.s32.totalorder %s348, %s349
      %p358 = scmp.eq.s32.totalorder %s39, 0
      %p359 = por %p357, %p358
      %p360 = scmp.ne.s32.totalorder %s348, %s349
      %p361 = scmp.eq.s32.totalorder %s40, 1
      %p362 = por %p360, %p361
      %p364 = scmp.ne.s32.totalorder %s349, %s363
      %p365 = scmp.eq.s32.totalorder %s40, 0
      %p366 = por %p364, %p365
      %s368 = sadd.s32 %s367, 1
      %p371 = scmp.eq.s32.totalorder %s34, 1
      %p372 = scmp.ne.s32.totalorder %s367, %s369
      %p373 = scmp.eq.s32.totalorder %s34, 0
      %p374 = por %p372, %p373
      %p375 = scmp.ne.s32.totalorder %s367, %s369
      %p376 = scmp.eq.s32.totalorder %s39, 1
      %p377 = por %p375, %p376
      %p378 = scmp.ne.s32.totalorder %s369, %s370
      %p379 = scmp.eq.s32.totalorder %s39, 0
      %p380 = por %p378, %p379
      %p381 = scmp.ne.s32.totalorder %s369, %s370
      %p382 = scmp.eq.s32.totalorder %s40, 1
      %p383 = por %p381, %p382
      %p385 = scmp.ne.s32.totalorder %s370, %s384
      %p386 = scmp.eq.s32.totalorder %s40, 0
      %p387 = por %p385, %p386
      %s389 = sadd.s32 %s388, 1
      %p392 = scmp.eq.s32.totalorder %s34, 1
      %p393 = scmp.ne.s32.totalorder %s388, %s390
      %p394 = scmp.eq.s32.totalorder %s34, 0
      %p395 = por %p393, %p394
      %p396 = scmp.ne.s32.totalorder %s388, %s390
      %p397 = scmp.eq.s32.totalorder %s39, 1
      %p398 = por %p396, %p397
      %p399 = scmp.ne.s32.totalorder %s390, %s391
      %p400 = scmp.eq.s32.totalorder %s39, 0
      %p401 = por %p399, %p400
      %p402 = scmp.ne.s32.totalorder %s390, %s391
      %p403 = scmp.eq.s32.totalorder %s40, 1
      %p404 = por %p402, %p403
      %p406 = scmp.ne.s32.totalorder %s391, %s405
      %p407 = scmp.eq.s32.totalorder %s40, 0
      %p408 = por %p406, %p407
      %s410 = sadd.s32 %s409, 1
      %p413 = scmp.eq.s32.totalorder %s34, 1
      %p414 = scmp.ne.s32.totalorder %s409, %s411
      %p415 = scmp.eq.s32.totalorder %s34, 0
      %p416 = por %p414, %p415
      %p417 = scmp.ne.s32.totalorder %s409, %s411
      %p418 = scmp.eq.s32.totalorder %s39, 1
      %p419 = por %p417, %p418
      %p420 = scmp.ne.s32.totalorder %s411, %s412
      %p421 = scmp.eq.s32.totalorder %s39, 0
      %p422 = por %p420, %p421
      %p423 = scmp.ne.s32.totalorder %s411, %s412
      %p424 = scmp.eq.s32.totalorder %s40, 1
      %p425 = por %p423, %p424
      %p427 = scmp.ne.s32.totalorder %s412, %s426
      %p428 = scmp.eq.s32.totalorder %s40, 0
      %p429 = por %p427, %p428
      %s430 = ssub.s32 %s34, %s41
      %p431 = scmp.eq.s32.totalorder %s430, 0
      %s433 = sadd.s32 %s432, 1
      %s434 = scalar_select %p431, %s432, %s433
      %p437 = pneg %p431
      %p438 = scmp.eq.s32.totalorder %s34, 1
      %p439 = por %p437, %p438
      %p440 = scmp.ne.s32.totalorder %s432, %s435
      %p441 = scmp.eq.s32.totalorder %s34, 0
      %p442 = por %p440, %p441
      %p443 = scmp.ne.s32.totalorder %s432, %s435
      %p444 = scmp.eq.s32.totalorder %s39, 1
      %p445 = por %p443, %p444
      %p446 = scmp.ne.s32.totalorder %s435, %s436
      %p447 = scmp.eq.s32.totalorder %s39, 0
      %p448 = por %p446, %p447
      %p449 = scmp.ne.s32.totalorder %s435, %s436
      %p450 = scmp.eq.s32.totalorder %s40, 1
      %p451 = por %p449, %p450
      %p453 = scmp.ne.s32.totalorder %s436, %s452
      %p454 = scmp.eq.s32.totalorder %s40, 0
      %p455 = por %p453, %p454
      %p456 = scmp.le.s32.totalorder 1, %s34
      %p457 = scmp.lt.s32.totalorder %s34, 3
      %p458 = pnand %p456, %p457
      %p459 = pneg %p458
      // Predicated region
      $region9: #{tpu_custom_call.1} parent=5 // pred_check
        _
      $region10: #{tpu_custom_call.1} parent=5 // pred_check_branch
        %461 = sbr.rel (%p458) target = $region12
      $region11: #{tpu_custom_call.1} parent=5 // pred_region
        %s462 = ssub.s32 %s34, 1
        // Predicated region
        $region13: #{tpu_custom_call.1} parent=11 // pred_check
          %p463 = pneg %p107
        $region14: #{tpu_custom_call.1} parent=11 // pred_check_branch
          %465 = sbr.rel (%p463) target = $region16
        $region15: #{tpu_custom_call.1} parent=11 // pred_region
          _
        $region16: #{tpu_custom_call.1} parent=11 // pred_fallthru
          _
        // Predicated region
        $region17: #{tpu_custom_call.1} parent=11 // pred_check
          %p466 = pneg %p128
        $region18: #{tpu_custom_call.1} parent=11 // pred_check_branch
          %468 = sbr.rel (%p466) target = $region20
        $region19: #{tpu_custom_call.1} parent=11 // pred_region
          %470 = vsyncadd [#allocation6], 0
          %s472 = sshll.u32 %s3, 4
          %s473 = int_to_ptr.hbm [resolvable:$true] %s472
          %s474 = sshll.u32 [#allocation7], 4
          %s475 = int_to_ptr.vmem [resolvable:$true] %s474
          %477 = dma.hbm_to_vmem [thread:$0]  %s473, 16, %s475, [#allocation6]
        $region20: #{tpu_custom_call.1} parent=11 // pred_fallthru
          _
        // Predicated region
        $region21: #{tpu_custom_call.1} parent=11 // pred_check
          %p478 = pneg %p149
        $region22: #{tpu_custom_call.1} parent=11 // pred_check_branch
          %480 = sbr.rel (%p478) target = $region24
        $region23: #{tpu_custom_call.1} parent=11 // pred_region
          _
        $region24: #{tpu_custom_call.1} parent=11 // pred_fallthru
          _
        // Predicated region
        $region25: #{tpu_custom_call.1} parent=11 // pred_check
          %p481 = pneg %p170
        $region26: #{tpu_custom_call.1} parent=11 // pred_check_branch
          %483 = sbr.rel (%p481) target = $region28
        $region27: #{tpu_custom_call.1} parent=11 // pred_region
          _
        $region28: #{tpu_custom_call.1} parent=11 // pred_fallthru
          _
        // Predicated region
        $region29: #{tpu_custom_call.1} parent=11 // pred_check
          %p484 = pneg %p191
        $region30: #{tpu_custom_call.1} parent=11 // pred_check_branch
          %486 = sbr.rel (%p484) target = $region32
        $region31: #{tpu_custom_call.1} parent=11 // pred_region
          _
        $region32: #{tpu_custom_call.1} parent=11 // pred_fallthru
          _
        // Predicated region
        $region33: #{tpu_custom_call.1} parent=11 // pred_check
          %p487 = pneg %p212
        $region34: #{tpu_custom_call.1} parent=11 // pred_check_branch
          %489 = sbr.rel (%p487) target = $region36
        $region35: #{tpu_custom_call.1} parent=11 // pred_region
          _
        $region36: #{tpu_custom_call.1} parent=11 // pred_fallthru
          _
        // Predicated region
        $region37: #{tpu_custom_call.1} parent=11 // pred_check
          %p490 = pneg %p233
        $region38: #{tpu_custom_call.1} parent=11 // pred_check_branch
          %492 = sbr.rel (%p490) target = $region40
        $region39: #{tpu_custom_call.1} parent=11 // pred_region
          _
        $region40: #{tpu_custom_call.1} parent=11 // pred_fallthru
          _
        // Predicated region
        $region41: #{tpu_custom_call.1} parent=11 // pred_check
          %p493 = pneg %p254
        $region42: #{tpu_custom_call.1} parent=11 // pred_check_branch
          %495 = sbr.rel (%p493) target = $region44
        $region43: #{tpu_custom_call.1} parent=11 // pred_region
          _
        $region44: #{tpu_custom_call.1} parent=11 // pred_fallthru
          _
        // Predicated region
        $region45: #{tpu_custom_call.1} parent=11 // pred_check
          %p496 = pneg %p275
        $region46: #{tpu_custom_call.1} parent=11 // pred_check_branch
          %498 = sbr.rel (%p496) target = $region48
        $region47: #{tpu_custom_call.1} parent=11 // pred_region
          %500 = vsyncadd [#allocation9], 0
          %s501 = sshll.u32 %s10, 4
          %s502 = int_to_ptr.hbm [resolvable:$true] %s501
          %s503 = sshll.u32 [#allocation8], 4
          %s504 = int_to_ptr.vmem [resolvable:$true] %s503
          %509 = dma.hbm_to_vmem [thread:$0]  %s502, 512, %s504, [#allocation9], 128, 128, 8
        $region48: #{tpu_custom_call.1} parent=11 // pred_fallthru
          _
        // Predicated region
        $region49: #{tpu_custom_call.1} parent=11 // pred_check
          %p510 = pneg %p296
        $region50: #{tpu_custom_call.1} parent=11 // pred_check_branch
          %512 = sbr.rel (%p510) target = $region52
        $region51: #{tpu_custom_call.1} parent=11 // pred_region
          _
        $region52: #{tpu_custom_call.1} parent=11 // pred_fallthru
          _
        // Predicated region
        $region53: #{tpu_custom_call.1} parent=11 // pred_check
          %p513 = pneg %p317
        $region54: #{tpu_custom_call.1} parent=11 // pred_check_branch
          %515 = sbr.rel (%p513) target = $region56
        $region55: #{tpu_custom_call.1} parent=11 // pred_region
          _
        $region56: #{tpu_custom_call.1} parent=11 // pred_fallthru
          _
        // Predicated region
        $region57: #{tpu_custom_call.1} parent=11 // pred_check
          %p516 = pneg %p338
        $region58: #{tpu_custom_call.1} parent=11 // pred_check_branch
          %518 = sbr.rel (%p516) target = $region60
        $region59: #{tpu_custom_call.1} parent=11 // pred_region
          _
        $region60: #{tpu_custom_call.1} parent=11 // pred_fallthru
          _
        // Predicated region
        $region61: #{tpu_custom_call.1} parent=11 // pred_check
          %p519 = pneg %p359
        $region62: #{tpu_custom_call.1} parent=11 // pred_check_branch
          %521 = sbr.rel (%p519) target = $region64
        $region63: #{tpu_custom_call.1} parent=11 // pred_region
          %523 = vsyncadd [#allocation9], 0
          %s524 = sshll.u32 %s14, 4
          %s525 = int_to_ptr.hbm [resolvable:$true] %s524
          %s526 = sshll.u32 [#allocation10], 4
          %s527 = int_to_ptr.vmem [resolvable:$true] %s526
          %532 = dma.hbm_to_vmem [thread:$0]  %s525, 512, %s527, [#allocation9], 128, 128, 8
        $region64: #{tpu_custom_call.1} parent=11 // pred_fallthru
          _
        // Predicated region
        $region65: #{tpu_custom_call.1} parent=11 // pred_check
          %p533 = pneg %p380
        $region66: #{tpu_custom_call.1} parent=11 // pred_check_branch
          %535 = sbr.rel (%p533) target = $region68
        $region67: #{tpu_custom_call.1} parent=11 // pred_region
          _
        $region68: #{tpu_custom_call.1} parent=11 // pred_fallthru
          _
        // Predicated region
        $region69: #{tpu_custom_call.1} parent=11 // pred_check
          %p536 = pneg %p401
        $region70: #{tpu_custom_call.1} parent=11 // pred_check_branch
          %538 = sbr.rel (%p536) target = $region72
        $region71: #{tpu_custom_call.1} parent=11 // pred_region
          _
        $region72: #{tpu_custom_call.1} parent=11 // pred_fallthru
          _
        // Predicated region
        $region73: #{tpu_custom_call.1} parent=11 // pred_check
          %p539 = pneg %p422
        $region74: #{tpu_custom_call.1} parent=11 // pred_check_branch
          %541 = sbr.rel (%p539) target = $region76
        $region75: #{tpu_custom_call.1} parent=11 // pred_region
          _
        $region76: #{tpu_custom_call.1} parent=11 // pred_fallthru
          _
      $region12: #{tpu_custom_call.1} parent=5 // pred_fallthru
        _
      %p542 = scmp.lt.s32.totalorder %s34, 2
      // Predicated region
      $region77: #{tpu_custom_call.1} parent=5 // pred_check
        %p543 = pneg %p542
      $region78: #{tpu_custom_call.1} parent=5 // pred_check_branch
        %545 = sbr.rel (%p543) target = $region80
      $region79: #{tpu_custom_call.1} parent=5 // pred_region
        // Predicated region
        $region81: #{tpu_custom_call.1} parent=79 // pred_check
          %p546 = pneg %p54
        $region82: #{tpu_custom_call.1} parent=79 // pred_check_branch
          %548 = sbr.rel (%p546) target = $region84
        $region83: #{tpu_custom_call.1} parent=79 // pred_region
          %s549 = sand.u32 %s44, 1
          %s550 = scalar_lea.sflag [#allocation3], %s549
          %s551 = sand.u32 %s44, 1
          %s552 = smul.addr %s551, 8
          %s553 = scalar_lea.vmem [#allocation2], %s552
          %555 = vsyncadd %s550, 0
          %s556 = smul.addr %s34, 8
          %s557 = scalar_lea.hbm %s0, %s556
          %s559 = sshll.u32 %s557, 4
          %s560 = int_to_ptr.hbm [resolvable:$true] %s559
          %s561 = sshll.u32 %s553, 4
          %s562 = int_to_ptr.vmem [resolvable:$true] %s561
          %564 = dma.hbm_to_vmem [thread:$0]  %s560, 128, %s562, %s550
        $region84: #{tpu_custom_call.1} parent=79 // pred_fallthru
          _
        // Predicated region
        $region85: #{tpu_custom_call.1} parent=79 // pred_check
          %p565 = pneg %p80
        $region86: #{tpu_custom_call.1} parent=79 // pred_check_branch
          %567 = sbr.rel (%p565) target = $region88
        $region87: #{tpu_custom_call.1} parent=79 // pred_region
          %s568 = sand.u32 %s34, 1
          %s569 = scalar_lea.sflag [#allocation6], %s568
          %s570 = sand.u32 %s70, 1
          %s571 = smul.addr %s570, 8
          %s572 = scalar_lea.vmem [#allocation5], %s571
          %574 = vsyncadd %s569, 0
          %s575 = smul.addr %s34, 8
          %s576 = scalar_lea.hbm %s1, %s575
          %s578 = sshll.u32 %s576, 4
          %s579 = int_to_ptr.hbm [resolvable:$true] %s578
          %s580 = sshll.u32 %s572, 4
          %s581 = int_to_ptr.vmem [resolvable:$true] %s580
          %583 = dma.hbm_to_vmem [thread:$0]  %s579, 128, %s581, %s569
        $region88: #{tpu_custom_call.1} parent=79 // pred_fallthru
          _
      $region80: #{tpu_custom_call.1} parent=5 // pred_fallthru
        _
      %p584 = scmp.le.s32.totalorder 1, %s34
      %p585 = scmp.lt.s32.totalorder %s34, 3
      %p586 = pnand %p584, %p585
      %p587 = pneg %p586
      // Predicated region
      $region89: #{tpu_custom_call.1} parent=5 // pred_check
        _
      $region90: #{tpu_custom_call.1} parent=5 // pred_check_branch
        %589 = sbr.rel (%p586) target = $region92
      $region91: #{tpu_custom_call.1} parent=5 // pred_region
        %s590 = ssub.s32 %s34, 1
        %s591 = sand.u32 %s47, 1
        %s592 = scalar_lea.sflag [#allocation3], %s591
        %s593 = sand.u32 %s47, 1
        %s594 = smul.addr %s593, 8
        %s595 = scalar_lea.vmem [#allocation2], %s594
        // Predicated region
        $region93: #{tpu_custom_call.1} parent=91 // pred_check
          %p596 = pneg %p60
        $region94: #{tpu_custom_call.1} parent=91 // pred_check_branch
          %598 = sbr.rel (%p596) target = $region96
        $region95: #{tpu_custom_call.1} parent=91 // pred_region
          %600 = dma.done %s592, 128
        $region96: #{tpu_custom_call.1} parent=91 // pred_fallthru
          _
        %s601 = sand.u32 %s39, 1
        %s602 = scalar_lea.sflag [#allocation6], %s601
        %s603 = sand.u32 %s73, 1
        %s604 = smul.addr %s603, 8
        %s605 = scalar_lea.vmem [#allocation5], %s604
        // Predicated region
        $region97: #{tpu_custom_call.1} parent=91 // pred_check
          %p606 = pneg %p86
        $region98: #{tpu_custom_call.1} parent=91 // pred_check_branch
          %608 = sbr.rel (%p606) target = $region100
        $region99: #{tpu_custom_call.1} parent=91 // pred_region
          %610 = dma.done %s602, 128
        $region100: #{tpu_custom_call.1} parent=91 // pred_fallthru
          _
        // Predicated region
        $region101: #{tpu_custom_call.1} parent=91 // pred_check
          %p611 = pneg %p128
        $region102: #{tpu_custom_call.1} parent=91 // pred_check_branch
          %613 = sbr.rel (%p611) target = $region104
        $region103: #{tpu_custom_call.1} parent=91 // pred_region
          %615 = dma.done [#allocation6], 16
        $region104: #{tpu_custom_call.1} parent=91 // pred_fallthru
          _
        // Predicated region
        $region105: #{tpu_custom_call.1} parent=91 // pred_check
          %p616 = pneg %p275
        $region106: #{tpu_custom_call.1} parent=91 // pred_check_branch
          %618 = sbr.rel (%p616) target = $region108
        $region107: #{tpu_custom_call.1} parent=91 // pred_region
          %620 = dma.done [#allocation9], 512
        $region108: #{tpu_custom_call.1} parent=91 // pred_fallthru
          _
        // Predicated region
        $region109: #{tpu_custom_call.1} parent=91 // pred_check
          %p621 = pneg %p359
        $region110: #{tpu_custom_call.1} parent=91 // pred_check_branch
          %623 = sbr.rel (%p621) target = $region112
        $region111: #{tpu_custom_call.1} parent=91 // pred_region
          %625 = dma.done [#allocation9], 512
        $region112: #{tpu_custom_call.1} parent=91 // pred_fallthru
          _
        %s626 = sand.u32 %s47, 1
        %s627 = scalar_lea.sflag [#allocation3], %s626
        %s628 = sand.u32 %s47, 1
        %s629 = smul.addr %s628, 8
        %s630 = scalar_lea.vmem [#allocation2], %s629
        %p631 = pneg %p60
        %p632 = pneg %p57
        %s633 = sand.u32 %s39, 1
        %s634 = scalar_lea.sflag [#allocation6], %s633
        %s635 = sand.u32 %s73, 1
        %s636 = smul.addr %s635, 8
        %s637 = scalar_lea.vmem [#allocation5], %s636
        %p638 = pneg %p86
        %p639 = pneg %p83
        %p640 = pneg %p107
        %p641 = pneg %p104
        %p642 = pneg %p128
        %p643 = pneg %p125
        %p644 = pneg %p149
        %p645 = pneg %p146
        %p646 = pneg %p170
        %p647 = pneg %p167
        %p648 = pneg %p191
        %p649 = pneg %p188
        %p650 = pneg %p212
        %p651 = pneg %p209
        %p652 = pneg %p233
        %p653 = pneg %p230
        %p654 = pneg %p254
        %p655 = pneg %p251
        %p656 = pneg %p275
        %p657 = pneg %p272
        %p658 = pneg %p296
        %p659 = pneg %p293
        %p660 = pneg %p317
        %p661 = pneg %p314
        %p662 = pneg %p338
        %p663 = pneg %p335
        %p664 = pneg %p359
        %p665 = pneg %p356
        %p666 = pneg %p380
        %p667 = pneg %p377
        %p668 = pneg %p401
        %p669 = pneg %p398
        %p670 = pneg %p422
        %p671 = pneg %p419
        %p672 = pneg %p448
        %p673 = pneg %p445
        %s674 = sand.u32 %s435, 1
        %s675 = scalar_lea.sflag [#allocation4], %s674
        %s676 = sand.u32 %s435, 1
        %s677 = smul.addr %s676, 8
        %s678 = scalar_lea.vmem [#allocation11], %s677
        %v679 = vld [vmem:[%s595] sm:$0xff]
        %vm680 = vcmask 261120
        %v681 = vsel %vm680, %v679, 0.0
        %682 = vadd.xlane.f32.xlu0 %v681
        %v683 = vpop.xlane.xlu0 %682
        %v684 = vrcp.pop 32.0
        %v685 = vmul.f32 32.0, %v684
        %v686 = vsub.f32 1.0, %v685
        %v687 = vmul.f32 %v684, %v686
        %v688 = vadd.f32 %v684, %v687
        %vm689 = vweird.f32 %v684
        %v690 = vsel %vm689, %v684, %v688
        %v691 = vmul.f32 %v683, %v690
        %v692 = vsub.f32 %v679, %v691
        %v693 = vmul.f32 %v692, %v692
        %v694 = vsel %vm680, %v693, 0.0
        %695 = vadd.xlane.f32.xlu0 %v694
        %v696 = vpop.xlane.xlu0 %695
        %v697 = vmul.f32 %v696, %v690
        %v698 = vadd.f32 %v697, 1e-05
        %v699 = vrsqrt.pop %v698
        %v700 = vmul.f32 %v699, %v698
        %v701 = vmul.f32 %v700, %v699
        %v702 = vmul.f32 0.5, %v701
        %v703 = vsub.f32 1.5, %v702
        %v704 = vmul.f32 %v699, %v703
        %vm705 = vweird.f32 %v698
        %vm706 = vweird.f32 %v699
        %vm707 = vmor %vm705, %vm706
        %v708 = vsel %vm707, %v699, %v704
        %v709 = vmul.f32 %v692, %v708
        %v710 = vld [vmem:[%s2] sm:$0x1]
        %v712 = vperm.slane %v710, 0
        %v714 = vmul.f32 %v709, %v712
        %v715 = vld [vmem:[#allocation7] sm:$0x1]
        %v717 = vperm.slane %v715, 0
        %v719 = vadd.f32 %v714, %v717
        %v720 = vld [vmem:[%s4] sm:$0xff]
        %v721 = vld [vmem:[%s4 + $0x8] sm:$0xff]
        %v722 = vld [vmem:[%s4 + $0x10] sm:$0xff]
        %v723 = vld [vmem:[%s4 + $0x18] sm:$0xff]
        %v724 = vld [vmem:[%s5] sm:$0x1]
        %v726 = vperm.slane %v724, 0
        %v729 = vsel %vm680, %v719, 0
        %731 = vmatpush.msra.mxu0 0.0
        %732 = vmatpush.msra.mxu0 0.0
        %733 = vmatpush.msra.mxu0 0.0
        %734 = vmatpush.msra.mxu0 0.0
        %735 = vmatpush.msra.mxu0 0.0
        %736 = vmatpush.msra.mxu0 0.0
        %737 = vmatpush.msra.mxu0 0.0
        %738 = vmatpush.msra.mxu0 0.0
        %739 = vmatpush.msra.mxu0 0.0
        %740 = vmatpush.msra.mxu0 0.0
        %741 = vmatpush.msra.mxu0 0.0
        %742 = vmatpush.msra.mxu0 0.0
        %743 = vmatpush.msra.mxu0 %v723
        %744 = vmatpush.msra.mxu0 %v722
        %745 = vmatpush.msra.mxu0 %v721
        %746 = vmatpush.msra.mxu0 %v720
        %747 = vmatmul.f32.gmra.mxu0 %v729
        %v748 = vpop.f32.mrf.mxu0
        %v749 = vadd.f32 %v726, %v748
        %750 = vdwg.mxu0
        %v751 = vmul.f32 %v749, 0.35355338
        %v752 = vld [vmem:[%s6] sm:$0xff]
        %v753 = vld [vmem:[%s6 + $0x8] sm:$0xff]
        %v754 = vld [vmem:[%s6 + $0x10] sm:$0xff]
        %v755 = vld [vmem:[%s6 + $0x18] sm:$0xff]
        %v756 = vld [vmem:[%s7] sm:$0x1]
        %v758 = vperm.slane %v756, 0
        %760 = vmatpush.msra.mxu0 0.0
        %761 = vmatpush.msra.mxu0 0.0
        %762 = vmatpush.msra.mxu0 0.0
        %763 = vmatpush.msra.mxu0 0.0
        %764 = vmatpush.msra.mxu0 0.0
        %765 = vmatpush.msra.mxu0 0.0
        %766 = vmatpush.msra.mxu0 0.0
        %767 = vmatpush.msra.mxu0 0.0
        %768 = vmatpush.msra.mxu0 0.0
        %769 = vmatpush.msra.mxu0 0.0
        %770 = vmatpush.msra.mxu0 0.0
        %771 = vmatpush.msra.mxu0 0.0
        %772 = vmatpush.msra.mxu0 %v755
        %773 = vmatpush.msra.mxu0 %v754
        %774 = vmatpush.msra.mxu0 %v753
        %775 = vmatpush.msra.mxu0 %v752
        %776 = vmatmul.f32.gmra.mxu0 %v729
        %v777 = vpop.f32.mrf.mxu0
        %v778 = vadd.f32 %v758, %v777
        %779 = vdwg.mxu0
        %v780 = vld [vmem:[%s8] sm:$0xff]
        %v781 = vld [vmem:[%s8 + $0x8] sm:$0xff]
        %v782 = vld [vmem:[%s8 + $0x10] sm:$0xff]
        %v783 = vld [vmem:[%s8 + $0x18] sm:$0xff]
        %v784 = vld [vmem:[%s9] sm:$0x1]
        %v786 = vperm.slane %v784, 0
        %788 = vmatpush.msra.mxu0 0.0
        %789 = vmatpush.msra.mxu0 0.0
        %790 = vmatpush.msra.mxu0 0.0
        %791 = vmatpush.msra.mxu0 0.0
        %792 = vmatpush.msra.mxu0 0.0
        %793 = vmatpush.msra.mxu0 0.0
        %794 = vmatpush.msra.mxu0 0.0
        %795 = vmatpush.msra.mxu0 0.0
        %796 = vmatpush.msra.mxu0 0.0
        %797 = vmatpush.msra.mxu0 0.0
        %798 = vmatpush.msra.mxu0 0.0
        %799 = vmatpush.msra.mxu0 0.0
        %800 = vmatpush.msra.mxu0 %v783
        %801 = vmatpush.msra.mxu0 %v782
        %802 = vmatpush.msra.mxu0 %v781
        %803 = vmatpush.msra.mxu0 %v780
        %804 = vmatmul.f32.gmra.mxu0 %v729
        %v805 = vpop.f32.mrf.mxu0
        %v806 = vadd.f32 %v786, %v805
        %807 = vdwg.mxu0
        %809 = vrot.lane.b32.xlu0 %v751, 120
        %v810 = vpop.permute.xlu0 %809
        %812 = vrot.lane.b32.xlu0 %v751, 112
        %v813 = vpop.permute.xlu0 %812
        %815 = vrot.lane.b32.xlu0 %v751, 104
        %v816 = vpop.permute.xlu0 %815
        %v818 = vrot.slane %v813, 4
        %vm819 = vcmask 1047556
        %v820 = vsel %vm819, %v818, %v751
        %v821 = vrot.slane %v751, 4
        %v822 = vsel %vm819, %v813, %v821
        %v824 = vunpack.c.l.s4 1983009808
        %v825 = vunpack.c.0.s8 %v824
        %v826 = vperm.slane %v820, %v825
        %v828 = vunpack.c.l.s4 1983009808
        %v829 = vunpack.c.0.s8 %v828
        %v830 = vperm.slane %v822, %v829
        %v831 = vrot.slane %v816, 4
        %v832 = vsel %vm819, %v831, %v810
        %v833 = vrot.slane %v810, 4
        %v834 = vsel %vm819, %v816, %v833
        %v836 = vunpack.c.l.s4 1983009808
        %v837 = vunpack.c.0.s8 %v836
        %v838 = vperm.slane %v832, %v837
        %v840 = vunpack.c.l.s4 1983009808
        %v841 = vunpack.c.0.s8 %v840
        %v842 = vperm.slane %v834, %v841
        %v843 = vrot.slane %v838, 4
        %v844 = vsel %vm819, %v843, %v826
        %v845 = vrot.slane %v826, 4
        %v846 = vsel %vm819, %v838, %v845
        %v848 = vunpack.c.l.s4 1934713408
        %v849 = vunpack.c.0.s8 %v848
        %v850 = vperm.slane %v844, %v849
        %v852 = vunpack.c.l.s4 1934713408
        %v853 = vunpack.c.0.s8 %v852
        %v854 = vperm.slane %v846, %v853
        %v855 = vrot.slane %v842, 4
        %v856 = vsel %vm819, %v855, %v830
        %v857 = vrot.slane %v830, 4
        %v858 = vsel %vm819, %v842, %v857
        %v860 = vunpack.c.l.s4 1934713408
        %v861 = vunpack.c.0.s8 %v860
        %v862 = vperm.slane %v856, %v861
        %v864 = vunpack.c.l.s4 1934713408
        %v865 = vunpack.c.0.s8 %v864
        %v866 = vperm.slane %v858, %v865
        %v867 = vrot.slane %v850, 4
        %v868 = vsel %vm819, 0.0, %v867
        %v869 = vrot.slane %v854, 4
        %v870 = vsel %vm819, 0.0, %v869
        %v871 = vrot.slane %v862, 4
        %v872 = vsel %vm819, 0.0, %v871
        %v873 = vrot.slane %v866, 4
        %v874 = vsel %vm819, 0.0, %v873
        %v875 = vsel %vm819, %v869, %v850
        %v877 = vunpack.c.l.s4 1983009808
        %v878 = vunpack.c.0.s8 %v877
        %v879 = vperm.slane %v875, %v878
        %v880 = vrot.slane %v870, 4
        %v881 = vsel %vm819, %v880, %v868
        %v883 = vunpack.c.l.s4 1983009808
        %v884 = vunpack.c.0.s8 %v883
        %v885 = vperm.slane %v881, %v884
        %v886 = vsel %vm819, %v873, %v862
        %v888 = vunpack.c.l.s4 1983009808
        %v889 = vunpack.c.0.s8 %v888
        %v890 = vperm.slane %v886, %v889
        %v891 = vrot.slane %v874, 4
        %v892 = vsel %vm819, %v891, %v872
        %v894 = vunpack.c.l.s4 1983009808
        %v895 = vunpack.c.0.s8 %v894
        %v896 = vperm.slane %v892, %v895
        %v897 = vrot.slane %v885, 4
        %v898 = vsel %vm819, %v897, %v879
        %v899 = vrot.slane %v879, 4
        %v900 = vsel %vm819, %v885, %v899
        %v902 = vunpack.c.l.s4 1934713408
        %v903 = vunpack.c.0.s8 %v902
        %v904 = vperm.slane %v898, %v903
        %v906 = vunpack.c.l.s4 1934713408
        %v907 = vunpack.c.0.s8 %v906
        %v908 = vperm.slane %v900, %v907
        %v909 = vrot.slane %v896, 4
        %v910 = vsel %vm819, %v909, %v890
        %v911 = vrot.slane %v890, 4
        %v912 = vsel %vm819, %v896, %v911
        %v914 = vunpack.c.l.s4 1934713408
        %v915 = vunpack.c.0.s8 %v914
        %v916 = vperm.slane %v910, %v915
        %v918 = vunpack.c.l.s4 1934713408
        %v919 = vunpack.c.0.s8 %v918
        %v920 = vperm.slane %v912, %v919
        %v921 = vrot.slane %v916, 4
        %v922 = vsel %vm819, %v921, %v904
        %v923 = vrot.slane %v904, 4
        %v924 = vsel %vm819, %v916, %v923
        %v925 = vrot.slane %v920, 4
        %v926 = vsel %vm819, %v925, %v908
        %v927 = vrot.slane %v908, 4
        %v928 = vsel %vm819, %v920, %v927
        %930 = vrot.lane.b32.xlu0 %v778, 120
        %v931 = vpop.permute.xlu0 %930
        %933 = vrot.lane.b32.xlu0 %v778, 112
        %v934 = vpop.permute.xlu0 %933
        %936 = vrot.lane.b32.xlu0 %v778, 104
        %v937 = vpop.permute.xlu0 %936
        %v939 = vrot.slane %v934, 4
        %v940 = vsel %vm819, %v939, %v778
        %v941 = vrot.slane %v778, 4
        %v942 = vsel %vm819, %v934, %v941
        %v944 = vunpack.c.l.s4 1983009808
        %v945 = vunpack.c.0.s8 %v944
        %v946 = vperm.slane %v940, %v945
        %v948 = vunpack.c.l.s4 1983009808
        %v949 = vunpack.c.0.s8 %v948
        %v950 = vperm.slane %v942, %v949
        %v951 = vrot.slane %v937, 4
        %v952 = vsel %vm819, %v951, %v931
        %v953 = vrot.slane %v931, 4
        %v954 = vsel %vm819, %v937, %v953
        %v956 = vunpack.c.l.s4 1983009808
        %v957 = vunpack.c.0.s8 %v956
        %v958 = vperm.slane %v952, %v957
        %v960 = vunpack.c.l.s4 1983009808
        %v961 = vunpack.c.0.s8 %v960
        %v962 = vperm.slane %v954, %v961
        %v963 = vrot.slane %v958, 4
        %v964 = vsel %vm819, %v963, %v946
        %v965 = vrot.slane %v946, 4
        %v966 = vsel %vm819, %v958, %v965
        %v968 = vunpack.c.l.s4 1934713408
        %v969 = vunpack.c.0.s8 %v968
        %v970 = vperm.slane %v964, %v969
        %v972 = vunpack.c.l.s4 1934713408
        %v973 = vunpack.c.0.s8 %v972
        %v974 = vperm.slane %v966, %v973
        %v975 = vrot.slane %v962, 4
        %v976 = vsel %vm819, %v975, %v950
        %v977 = vrot.slane %v950, 4
        %v978 = vsel %vm819, %v962, %v977
        %v980 = vunpack.c.l.s4 1934713408
        %v981 = vunpack.c.0.s8 %v980
        %v982 = vperm.slane %v976, %v981
        %v984 = vunpack.c.l.s4 1934713408
        %v985 = vunpack.c.0.s8 %v984
        %v986 = vperm.slane %v978, %v985
        %v987 = vrot.slane %v970, 4
        %v988 = vsel %vm819, 0.0, %v987
        %v989 = vrot.slane %v974, 4
        %v990 = vsel %vm819, 0.0, %v989
        %v991 = vrot.slane %v982, 4
        %v992 = vsel %vm819, 0.0, %v991
        %v993 = vrot.slane %v986, 4
        %v994 = vsel %vm819, 0.0, %v993
        %v995 = vsel %vm819, %v989, %v970
        %v997 = vunpack.c.l.s4 1983009808
        %v998 = vunpack.c.0.s8 %v997
        %v999 = vperm.slane %v995, %v998
        %v1000 = vrot.slane %v990, 4
        %v1001 = vsel %vm819, %v1000, %v988
        %v1003 = vunpack.c.l.s4 1983009808
        %v1004 = vunpack.c.0.s8 %v1003
        %v1005 = vperm.slane %v1001, %v1004
        %v1006 = vsel %vm819, %v993, %v982
        %v1008 = vunpack.c.l.s4 1983009808
        %v1009 = vunpack.c.0.s8 %v1008
        %v1010 = vperm.slane %v1006, %v1009
        %v1011 = vrot.slane %v994, 4
        %v1012 = vsel %vm819, %v1011, %v992
        %v1014 = vunpack.c.l.s4 1983009808
        %v1015 = vunpack.c.0.s8 %v1014
        %v1016 = vperm.slane %v1012, %v1015
        %v1017 = vrot.slane %v1005, 4
        %v1018 = vsel %vm819, %v1017, %v999
        %v1019 = vrot.slane %v999, 4
        %v1020 = vsel %vm819, %v1005, %v1019
        %v1022 = vunpack.c.l.s4 1934713408
        %v1023 = vunpack.c.0.s8 %v1022
        %v1024 = vperm.slane %v1018, %v1023
        %v1026 = vunpack.c.l.s4 1934713408
        %v1027 = vunpack.c.0.s8 %v1026
        %v1028 = vperm.slane %v1020, %v1027
        %v1029 = vrot.slane %v1016, 4
        %v1030 = vsel %vm819, %v1029, %v1010
        %v1031 = vrot.slane %v1010, 4
        %v1032 = vsel %vm819, %v1016, %v1031
        %v1034 = vunpack.c.l.s4 1934713408
        %v1035 = vunpack.c.0.s8 %v1034
        %v1036 = vperm.slane %v1030, %v1035
        %v1038 = vunpack.c.l.s4 1934713408
        %v1039 = vunpack.c.0.s8 %v1038
        %v1040 = vperm.slane %v1032, %v1039
        %v1041 = vrot.slane %v1036, 4
        %v1042 = vsel %vm819, %v1041, %v1024
        %v1043 = vrot.slane %v1024, 4
        %v1044 = vsel %vm819, %v1036, %v1043
        %v1045 = vrot.slane %v1040, 4
        %v1046 = vsel %vm819, %v1045, %v1028
        %v1047 = vrot.slane %v1028, 4
        %v1048 = vsel %vm819, %v1040, %v1047
        %1050 = vrot.lane.b32.xlu0 %v806, 120
        %v1051 = vpop.permute.xlu0 %1050
        %1053 = vrot.lane.b32.xlu0 %v806, 112
        %v1054 = vpop.permute.xlu0 %1053
        %1056 = vrot.lane.b32.xlu0 %v806, 104
        %v1057 = vpop.permute.xlu0 %1056
        %v1059 = vrot.slane %v1054, 4
        %v1060 = vsel %vm819, %v1059, %v806
        %v1061 = vrot.slane %v806, 4
        %v1062 = vsel %vm819, %v1054, %v1061
        %v1064 = vunpack.c.l.s4 1983009808
        %v1065 = vunpack.c.0.s8 %v1064
        %v1066 = vperm.slane %v1060, %v1065
        %v1068 = vunpack.c.l.s4 1983009808
        %v1069 = vunpack.c.0.s8 %v1068
        %v1070 = vperm.slane %v1062, %v1069
        %v1071 = vrot.slane %v1057, 4
        %v1072 = vsel %vm819, %v1071, %v1051
        %v1073 = vrot.slane %v1051, 4
        %v1074 = vsel %vm819, %v1057, %v1073
        %v1076 = vunpack.c.l.s4 1983009808
        %v1077 = vunpack.c.0.s8 %v1076
        %v1078 = vperm.slane %v1072, %v1077
        %v1080 = vunpack.c.l.s4 1983009808
        %v1081 = vunpack.c.0.s8 %v1080
        %v1082 = vperm.slane %v1074, %v1081
        %v1083 = vrot.slane %v1078, 4
        %v1084 = vsel %vm819, %v1083, %v1066
        %v1085 = vrot.slane %v1066, 4
        %v1086 = vsel %vm819, %v1078, %v1085
        %v1088 = vunpack.c.l.s4 1934713408
        %v1089 = vunpack.c.0.s8 %v1088
        %v1090 = vperm.slane %v1084, %v1089
        %v1092 = vunpack.c.l.s4 1934713408
        %v1093 = vunpack.c.0.s8 %v1092
        %v1094 = vperm.slane %v1086, %v1093
        %v1095 = vrot.slane %v1082, 4
        %v1096 = vsel %vm819, %v1095, %v1070
        %v1097 = vrot.slane %v1070, 4
        %v1098 = vsel %vm819, %v1082, %v1097
        %v1100 = vunpack.c.l.s4 1934713408
        %v1101 = vunpack.c.0.s8 %v1100
        %v1102 = vperm.slane %v1096, %v1101
        %v1104 = vunpack.c.l.s4 1934713408
        %v1105 = vunpack.c.0.s8 %v1104
        %v1106 = vperm.slane %v1098, %v1105
        %v1107 = vrot.slane %v1090, 4
        %v1108 = vsel %vm819, 0.0, %v1107
        %v1109 = vrot.slane %v1094, 4
        %v1110 = vsel %vm819, 0.0, %v1109
        %v1111 = vrot.slane %v1102, 4
        %v1112 = vsel %vm819, 0.0, %v1111
        %v1113 = vrot.slane %v1106, 4
        %v1114 = vsel %vm819, 0.0, %v1113
        %v1115 = vsel %vm819, %v1109, %v1090
        %v1117 = vunpack.c.l.s4 1983009808
        %v1118 = vunpack.c.0.s8 %v1117
        %v1119 = vperm.slane %v1115, %v1118
        %v1120 = vrot.slane %v1110, 4
        %v1121 = vsel %vm819, %v1120, %v1108
        %v1123 = vunpack.c.l.s4 1983009808
        %v1124 = vunpack.c.0.s8 %v1123
        %v1125 = vperm.slane %v1121, %v1124
        %v1126 = vsel %vm819, %v1113, %v1102
        %v1128 = vunpack.c.l.s4 1983009808
        %v1129 = vunpack.c.0.s8 %v1128
        %v1130 = vperm.slane %v1126, %v1129
        %v1131 = vrot.slane %v1114, 4
        %v1132 = vsel %vm819, %v1131, %v1112
        %v1134 = vunpack.c.l.s4 1983009808
        %v1135 = vunpack.c.0.s8 %v1134
        %v1136 = vperm.slane %v1132, %v1135
        %v1137 = vrot.slane %v1125, 4
        %v1138 = vsel %vm819, %v1137, %v1119
        %v1139 = vrot.slane %v1119, 4
        %v1140 = vsel %vm819, %v1125, %v1139
        %v1142 = vunpack.c.l.s4 1934713408
        %v1143 = vunpack.c.0.s8 %v1142
        %v1144 = vperm.slane %v1138, %v1143
        %v1146 = vunpack.c.l.s4 1934713408
        %v1147 = vunpack.c.0.s8 %v1146
        %v1148 = vperm.slane %v1140, %v1147
        %v1149 = vrot.slane %v1136, 4
        %v1150 = vsel %vm819, %v1149, %v1130
        %v1151 = vrot.slane %v1130, 4
        %v1152 = vsel %vm819, %v1136, %v1151
        %v1154 = vunpack.c.l.s4 1934713408
        %v1155 = vunpack.c.0.s8 %v1154
        %v1156 = vperm.slane %v1150, %v1155
        %v1158 = vunpack.c.l.s4 1934713408
        %v1159 = vunpack.c.0.s8 %v1158
        %v1160 = vperm.slane %v1152, %v1159
        %v1161 = vrot.slane %v1156, 4
        %v1162 = vsel %vm819, %v1161, %v1144
        %v1163 = vrot.slane %v1144, 4
        %v1164 = vsel %vm819, %v1156, %v1163
        %v1165 = vrot.slane %v1160, 4
        %v1166 = vsel %vm819, %v1165, %v1148
        %v1167 = vrot.slane %v1148, 4
        %v1168 = vsel %vm819, %v1160, %v1167
        %vm1169 = vcmask 64512
        %v1171 = vsel %vm1169, %v922, 0
        %v1174 = vsel %vm1169, %v1042, 0
        %1176 = vmatpush.xpose.msra.mxu0 0.0
        %1177 = vmatpush.xpose.msra.mxu0 0.0
        %1178 = vmatpush.xpose.msra.mxu0 0.0
        %1179 = vmatpush.xpose.msra.mxu0 0.0
        %1180 = vmatpush.xpose.msra.mxu0 0.0
        %1181 = vmatpush.xpose.msra.mxu0 0.0
        %1182 = vmatpush.xpose.msra.mxu0 0.0
        %1183 = vmatpush.xpose.msra.mxu0 0.0
        %1184 = vmatpush.xpose.msra.mxu0 0.0
        %1185 = vmatpush.xpose.msra.mxu0 0.0
        %1186 = vmatpush.xpose.msra.mxu0 0.0
        %1187 = vmatpush.xpose.msra.mxu0 0.0
        %1188 = vmatpush.xpose.msra.mxu0 0.0
        %1189 = vmatpush.xpose.msra.mxu0 0.0
        %1190 = vmatpush.xpose.msra.mxu0 0.0
        %1191 = vmatpush.xpose.msra.mxu0 %v1174
        %1192 = vmatmul.f32.gmra.mxu0 %v1171
        %v1193 = vpop.f32.mrf.mxu0
        %v1194 = vadd.f32 0.0, %v1193
        %1195 = vdwg.mxu0
        %v1197 = vsel %vm1169, %v924, 0
        %v1200 = vsel %vm1169, %v1044, 0
        %1202 = vmatpush.xpose.msra.mxu0 0.0
        %1203 = vmatpush.xpose.msra.mxu0 0.0
        %1204 = vmatpush.xpose.msra.mxu0 0.0
        %1205 = vmatpush.xpose.msra.mxu0 0.0
        %1206 = vmatpush.xpose.msra.mxu0 0.0
        %1207 = vmatpush.xpose.msra.mxu0 0.0
        %1208 = vmatpush.xpose.msra.mxu0 0.0
        %1209 = vmatpush.xpose.msra.mxu0 0.0
        %1210 = vmatpush.xpose.msra.mxu0 0.0
        %1211 = vmatpush.xpose.msra.mxu0 0.0
        %1212 = vmatpush.xpose.msra.mxu0 0.0
        %1213 = vmatpush.xpose.msra.mxu0 0.0
        %1214 = vmatpush.xpose.msra.mxu0 0.0
        %1215 = vmatpush.xpose.msra.mxu0 0.0
        %1216 = vmatpush.xpose.msra.mxu0 0.0
        %1217 = vmatpush.xpose.msra.mxu0 %v1200
        %1218 = vmatmul.f32.gmra.mxu0 %v1197
        %v1219 = vpop.f32.mrf.mxu0
        %v1220 = vadd.f32 0.0, %v1219
        %1221 = vdwg.mxu0
        %v1223 = vsel %vm1169, %v926, 0
        %v1226 = vsel %vm1169, %v1046, 0
        %1228 = vmatpush.xpose.msra.mxu0 0.0
        %1229 = vmatpush.xpose.msra.mxu0 0.0
        %1230 = vmatpush.xpose.msra.mxu0 0.0
        %1231 = vmatpush.xpose.msra.mxu0 0.0
        %1232 = vmatpush.xpose.msra.mxu0 0.0
        %1233 = vmatpush.xpose.msra.mxu0 0.0
        %1234 = vmatpush.xpose.msra.mxu0 0.0
        %1235 = vmatpush.xpose.msra.mxu0 0.0
        %1236 = vmatpush.xpose.msra.mxu0 0.0
        %1237 = vmatpush.xpose.msra.mxu0 0.0
        %1238 = vmatpush.xpose.msra.mxu0 0.0
        %1239 = vmatpush.xpose.msra.mxu0 0.0
        %1240 = vmatpush.xpose.msra.mxu0 0.0
        %1241 = vmatpush.xpose.msra.mxu0 0.0
        %1242 = vmatpush.xpose.msra.mxu0 0.0
        %1243 = vmatpush.xpose.msra.mxu0 %v1226
        %1244 = vmatmul.f32.gmra.mxu0 %v1223
        %v1245 = vpop.f32.mrf.mxu0
        %v1246 = vadd.f32 0.0, %v1245
        %1247 = vdwg.mxu0
        %v1249 = vsel %vm1169, %v928, 0
        %v1252 = vsel %vm1169, %v1048, 0
        %1254 = vmatpush.xpose.msra.mxu0 0.0
        %1255 = vmatpush.xpose.msra.mxu0 0.0
        %1256 = vmatpush.xpose.msra.mxu0 0.0
        %1257 = vmatpush.xpose.msra.mxu0 0.0
        %1258 = vmatpush.xpose.msra.mxu0 0.0
        %1259 = vmatpush.xpose.msra.mxu0 0.0
        %1260 = vmatpush.xpose.msra.mxu0 0.0
        %1261 = vmatpush.xpose.msra.mxu0 0.0
        %1262 = vmatpush.xpose.msra.mxu0 0.0
        %1263 = vmatpush.xpose.msra.mxu0 0.0
        %1264 = vmatpush.xpose.msra.mxu0 0.0
        %1265 = vmatpush.xpose.msra.mxu0 0.0
        %1266 = vmatpush.xpose.msra.mxu0 0.0
        %1267 = vmatpush.xpose.msra.mxu0 0.0
        %1268 = vmatpush.xpose.msra.mxu0 0.0
        %1269 = vmatpush.xpose.msra.mxu0 %v1252
        %1270 = vmatmul.f32.gmra.mxu0 %v1249
        %v1271 = vpop.f32.mrf.mxu0
        %v1272 = vadd.f32 0.0, %v1271
        %1273 = vdwg.mxu0
        %v1274 = vld [vmem:[%s605] sm:$0xff]
        %vm1275 = vcmp.ne.f32.partialorder %v1274, 0.0
        %v1276 = vsel %vm1275, 1, 0
        %vm1277 = vcmp.eq.s32.totalorder %v1276, 1
        %v1278 = vsel %vm1277, %v1194, -1e+09
        %v1279 = vsel %vm1277, %v1220, -1e+09
        %v1280 = vsel %vm1277, %v1246, -1e+09
        %v1281 = vsel %vm1277, %v1272, -1e+09
        %v1282 = vsel %vm1169, %v1278, -inf
        %1283 = vmax.xlane.f32.xlu0 %v1282
        %v1284 = vpop.xlane.xlu0 %1283
        %v1285 = vsel %vm1169, %v1279, -inf
        %1286 = vmax.xlane.f32.xlu0 %v1285
        %v1287 = vpop.xlane.xlu0 %1286
        %v1288 = vsel %vm1169, %v1280, -inf
        %1289 = vmax.xlane.f32.xlu0 %v1288
        %v1290 = vpop.xlane.xlu0 %1289
        %v1291 = vsel %vm1169, %v1281, -inf
        %1292 = vmax.xlane.f32.xlu0 %v1291
        %v1293 = vpop.xlane.xlu0 %1292
        %v1294 = vsub.f32 %v1278, %v1284
        %v1295 = vsub.f32 %v1279, %v1287
        %v1296 = vsub.f32 %v1280, %v1290
        %v1297 = vsub.f32 %v1281, %v1293
        %v1298 = vmul.f32 %v1294, 1.442695
        %v1299 = vpow.pop %v1298
        %v1300 = vmul.f32 %v1295, 1.442695
        %v1301 = vpow.pop %v1300
        %v1302 = vmul.f32 %v1296, 1.442695
        %v1303 = vpow.pop %v1302
        %v1304 = vmul.f32 %v1297, 1.442695
        %v1305 = vpow.pop %v1304
        %v1306 = vsel %vm1169, %v1299, 0.0
        %1307 = vadd.xlane.f32.xlu0 %v1306
        %v1308 = vpop.xlane.xlu0 %1307
        %v1309 = vsel %vm1169, %v1301, 0.0
        %1310 = vadd.xlane.f32.xlu0 %v1309
        %v1311 = vpop.xlane.xlu0 %1310
        %v1312 = vsel %vm1169, %v1303, 0.0
        %1313 = vadd.xlane.f32.xlu0 %v1312
        %v1314 = vpop.xlane.xlu0 %1313
        %v1315 = vsel %vm1169, %v1305, 0.0
        %1316 = vadd.xlane.f32.xlu0 %v1315
        %v1317 = vpop.xlane.xlu0 %1316
        %v1318 = vrcp.pop %v1308
        %v1319 = vmul.f32 %v1308, %v1318
        %v1320 = vsub.f32 1.0, %v1319
        %v1321 = vmul.f32 %v1318, %v1320
        %v1322 = vadd.f32 %v1318, %v1321
        %vm1323 = vweird.f32 %v1308
        %vm1324 = vweird.f32 %v1318
        %vm1325 = vmor %vm1323, %vm1324
        %v1326 = vsel %vm1325, %v1318, %v1322
        %v1327 = vand.u32 2147483647, %v1308
        %vm1328 = vcmp.eq.f32.partialorder %v1327, 8.507059e+37
        %v1329 = vand.u32 %v1308, 2147483648
        %v1330 = vor.u32 1.1754944e-38, %v1329
        %v1331 = vsel %vm1328, %v1330, %v1326
        %v1332 = vrcp.pop %v1311
        %v1333 = vmul.f32 %v1311, %v1332
        %v1334 = vsub.f32 1.0, %v1333
        %v1335 = vmul.f32 %v1332, %v1334
        %v1336 = vadd.f32 %v1332, %v1335
        %vm1337 = vweird.f32 %v1311
        %vm1338 = vweird.f32 %v1332
        %vm1339 = vmor %vm1337, %vm1338
        %v1340 = vsel %vm1339, %v1332, %v1336
        %v1341 = vand.u32 2147483647, %v1311
        %vm1342 = vcmp.eq.f32.partialorder %v1341, 8.507059e+37
        %v1343 = vand.u32 %v1311, 2147483648
        %v1344 = vor.u32 1.1754944e-38, %v1343
        %v1345 = vsel %vm1342, %v1344, %v1340
        %v1346 = vrcp.pop %v1314
        %v1347 = vmul.f32 %v1314, %v1346
        %v1348 = vsub.f32 1.0, %v1347
        %v1349 = vmul.f32 %v1346, %v1348
        %v1350 = vadd.f32 %v1346, %v1349
        %vm1351 = vweird.f32 %v1314
        %vm1352 = vweird.f32 %v1346
        %vm1353 = vmor %vm1351, %vm1352
        %v1354 = vsel %vm1353, %v1346, %v1350
        %v1355 = vand.u32 2147483647, %v1314
        %vm1356 = vcmp.eq.f32.partialorder %v1355, 8.507059e+37
        %v1357 = vand.u32 %v1314, 2147483648
        %v1358 = vor.u32 1.1754944e-38, %v1357
        %v1359 = vsel %vm1356, %v1358, %v1354
        %v1360 = vrcp.pop %v1317
        %v1361 = vmul.f32 %v1317, %v1360
        %v1362 = vsub.f32 1.0, %v1361
        %v1363 = vmul.f32 %v1360, %v1362
        %v1364 = vadd.f32 %v1360, %v1363
        %vm1365 = vweird.f32 %v1317
        %vm1366 = vweird.f32 %v1360
        %vm1367 = vmor %vm1365, %vm1366
        %v1368 = vsel %vm1367, %v1360, %v1364
        %v1369 = vand.u32 2147483647, %v1317
        %vm1370 = vcmp.eq.f32.partialorder %v1369, 8.507059e+37
        %v1371 = vand.u32 %v1317, 2147483648
        %v1372 = vor.u32 1.1754944e-38, %v1371
        %v1373 = vsel %vm1370, %v1372, %v1368
        %v1374 = vmul.f32 %v1299, %v1331
        %v1375 = vmul.f32 %v1301, %v1345
        %v1376 = vmul.f32 %v1303, %v1359
        %v1377 = vmul.f32 %v1305, %v1373
        %v1379 = vsel %vm1169, %v1374, 0
        %1381 = vmatpush.msra.mxu0 0.0
        %1382 = vmatpush.msra.mxu0 0.0
        %1383 = vmatpush.msra.mxu0 0.0
        %1384 = vmatpush.msra.mxu0 0.0
        %1385 = vmatpush.msra.mxu0 0.0
        %1386 = vmatpush.msra.mxu0 0.0
        %1387 = vmatpush.msra.mxu0 0.0
        %1388 = vmatpush.msra.mxu0 0.0
        %1389 = vmatpush.msra.mxu0 0.0
        %1390 = vmatpush.msra.mxu0 0.0
        %1391 = vmatpush.msra.mxu0 0.0
        %1392 = vmatpush.msra.mxu0 0.0
        %1393 = vmatpush.msra.mxu0 0.0
        %1394 = vmatpush.msra.mxu0 0.0
        %1395 = vmatpush.msra.mxu0 0.0
        %1396 = vmatpush.msra.mxu0 %v1162
        %1397 = vmatmul.f32.gmra.mxu0 %v1379
        %v1398 = vpop.f32.mrf.mxu0
        %v1399 = vadd.f32 0.0, %v1398
        %1400 = vdwg.mxu0
        %v1402 = vsel %vm1169, %v1375, 0
        %1404 = vmatpush.msra.mxu0 0.0
        %1405 = vmatpush.msra.mxu0 0.0
        %1406 = vmatpush.msra.mxu0 0.0
        %1407 = vmatpush.msra.mxu0 0.0
        %1408 = vmatpush.msra.mxu0 0.0
        %1409 = vmatpush.msra.mxu0 0.0
        %1410 = vmatpush.msra.mxu0 0.0
        %1411 = vmatpush.msra.mxu0 0.0
        %1412 = vmatpush.msra.mxu0 0.0
        %1413 = vmatpush.msra.mxu0 0.0
        %1414 = vmatpush.msra.mxu0 0.0
        %1415 = vmatpush.msra.mxu0 0.0
        %1416 = vmatpush.msra.mxu0 0.0
        %1417 = vmatpush.msra.mxu0 0.0
        %1418 = vmatpush.msra.mxu0 0.0
        %1419 = vmatpush.msra.mxu0 %v1164
        %1420 = vmatmul.f32.gmra.mxu0 %v1402
        %v1421 = vpop.f32.mrf.mxu0
        %v1422 = vadd.f32 0.0, %v1421
        %1423 = vdwg.mxu0
        %v1425 = vsel %vm1169, %v1376, 0
        %1427 = vmatpush.msra.mxu0 0.0
        %1428 = vmatpush.msra.mxu0 0.0
        %1429 = vmatpush.msra.mxu0 0.0
        %1430 = vmatpush.msra.mxu0 0.0
        %1431 = vmatpush.msra.mxu0 0.0
        %1432 = vmatpush.msra.mxu0 0.0
        %1433 = vmatpush.msra.mxu0 0.0
        %1434 = vmatpush.msra.mxu0 0.0
        %1435 = vmatpush.msra.mxu0 0.0
        %1436 = vmatpush.msra.mxu0 0.0
        %1437 = vmatpush.msra.mxu0 0.0
        %1438 = vmatpush.msra.mxu0 0.0
        %1439 = vmatpush.msra.mxu0 0.0
        %1440 = vmatpush.msra.mxu0 0.0
        %1441 = vmatpush.msra.mxu0 0.0
        %1442 = vmatpush.msra.mxu0 %v1166
        %1443 = vmatmul.f32.gmra.mxu0 %v1425
        %v1444 = vpop.f32.mrf.mxu0
        %v1445 = vadd.f32 0.0, %v1444
        %1446 = vdwg.mxu0
        %v1448 = vsel %vm1169, %v1377, 0
        %1450 = vmatpush.msra.mxu0 0.0
        %1451 = vmatpush.msra.mxu0 0.0
        %1452 = vmatpush.msra.mxu0 0.0
        %1453 = vmatpush.msra.mxu0 0.0
        %1454 = vmatpush.msra.mxu0 0.0
        %1455 = vmatpush.msra.mxu0 0.0
        %1456 = vmatpush.msra.mxu0 0.0
        %1457 = vmatpush.msra.mxu0 0.0
        %1458 = vmatpush.msra.mxu0 0.0
        %1459 = vmatpush.msra.mxu0 0.0
        %1460 = vmatpush.msra.mxu0 0.0
        %1461 = vmatpush.msra.mxu0 0.0
        %1462 = vmatpush.msra.mxu0 0.0
        %1463 = vmatpush.msra.mxu0 0.0
        %1464 = vmatpush.msra.mxu0 0.0
        %1465 = vmatpush.msra.mxu0 %v1168
        %1466 = vmatmul.f32.gmra.mxu0 %v1448
        %v1467 = vpop.f32.mrf.mxu0
        %v1468 = vadd.f32 0.0, %v1467
        %1469 = vdwg.mxu0
        %v1470 = vrot.slane %v1445, 4
        %v1471 = vsel %vm819, %v1470, %v1399
        %v1472 = vrot.slane %v1399, 4
        %v1473 = vsel %vm819, %v1445, %v1472
        %v1475 = vunpack.c.l.s4 1983009808
        %v1476 = vunpack.c.0.s8 %v1475
        %v1477 = vperm.slane %v1471, %v1476
        %v1479 = vunpack.c.l.s4 1983009808
        %v1480 = vunpack.c.0.s8 %v1479
        %v1481 = vperm.slane %v1473, %v1480
        %v1482 = vrot.slane %v1468, 4
        %v1483 = vsel %vm819, %v1482, %v1422
        %v1484 = vrot.slane %v1422, 4
        %v1485 = vsel %vm819, %v1468, %v1484
        %v1487 = vunpack.c.l.s4 1983009808
        %v1488 = vunpack.c.0.s8 %v1487
        %v1489 = vperm.slane %v1483, %v1488
        %v1491 = vunpack.c.l.s4 1983009808
        %v1492 = vunpack.c.0.s8 %v1491
        %v1493 = vperm.slane %v1485, %v1492
        %v1494 = vrot.slane %v1489, 4
        %v1495 = vsel %vm819, %v1494, %v1477
        %v1496 = vrot.slane %v1477, 4
        %v1497 = vsel %vm819, %v1489, %v1496
        %v1499 = vunpack.c.l.s4 1934713408
        %v1500 = vunpack.c.0.s8 %v1499
        %v1501 = vperm.slane %v1495, %v1500
        %v1503 = vunpack.c.l.s4 1934713408
        %v1504 = vunpack.c.0.s8 %v1503
        %v1505 = vperm.slane %v1497, %v1504
        %v1506 = vrot.slane %v1493, 4
        %v1507 = vsel %vm819, %v1506, %v1481
        %v1508 = vrot.slane %v1481, 4
        %v1509 = vsel %vm819, %v1493, %v1508
        %v1511 = vunpack.c.l.s4 1934713408
        %v1512 = vunpack.c.0.s8 %v1511
        %v1513 = vperm.slane %v1507, %v1512
        %v1515 = vunpack.c.l.s4 1934713408
        %v1516 = vunpack.c.0.s8 %v1515
        %v1517 = vperm.slane %v1509, %v1516
        %v1518 = vrot.slane %v1501, 4
        %v1519 = vsel %vm819, 0.0, %v1518
        %v1520 = vrot.slane %v1505, 4
        %v1521 = vsel %vm819, 0.0, %v1520
        %v1522 = vrot.slane %v1513, 4
        %v1523 = vsel %vm819, 0.0, %v1522
        %v1524 = vrot.slane %v1517, 4
        %v1525 = vsel %vm819, 0.0, %v1524
        %v1526 = vsel %vm819, %v1520, %v1501
        %v1528 = vunpack.c.l.s4 1983009808
        %v1529 = vunpack.c.0.s8 %v1528
        %v1530 = vperm.slane %v1526, %v1529
        %v1531 = vrot.slane %v1521, 4
        %v1532 = vsel %vm819, %v1531, %v1519
        %v1534 = vunpack.c.l.s4 1983009808
        %v1535 = vunpack.c.0.s8 %v1534
        %v1536 = vperm.slane %v1532, %v1535
        %v1537 = vsel %vm819, %v1524, %v1513
        %v1539 = vunpack.c.l.s4 1983009808
        %v1540 = vunpack.c.0.s8 %v1539
        %v1541 = vperm.slane %v1537, %v1540
        %v1542 = vrot.slane %v1525, 4
        %v1543 = vsel %vm819, %v1542, %v1523
        %v1545 = vunpack.c.l.s4 1983009808
        %v1546 = vunpack.c.0.s8 %v1545
        %v1547 = vperm.slane %v1543, %v1546
        %v1548 = vrot.slane %v1536, 4
        %v1549 = vsel %vm819, %v1548, %v1530
        %v1550 = vrot.slane %v1530, 4
        %v1551 = vsel %vm819, %v1536, %v1550
        %v1553 = vunpack.c.l.s4 1934713408
        %v1554 = vunpack.c.0.s8 %v1553
        %v1555 = vperm.slane %v1549, %v1554
        %v1557 = vunpack.c.l.s4 1934713408
        %v1558 = vunpack.c.0.s8 %v1557
        %v1559 = vperm.slane %v1551, %v1558
        %v1560 = vrot.slane %v1547, 4
        %v1561 = vsel %vm819, %v1560, %v1541
        %v1562 = vrot.slane %v1541, 4
        %v1563 = vsel %vm819, %v1547, %v1562
        %v1565 = vunpack.c.l.s4 1934713408
        %v1566 = vunpack.c.0.s8 %v1565
        %v1567 = vperm.slane %v1561, %v1566
        %v1569 = vunpack.c.l.s4 1934713408
        %v1570 = vunpack.c.0.s8 %v1569
        %v1571 = vperm.slane %v1563, %v1570
        %v1572 = vrot.slane %v1567, 4
        %v1573 = vsel %vm819, %v1572, %v1555
        %v1574 = vrot.slane %v1555, 4
        %v1575 = vsel %vm819, %v1567, %v1574
        %v1576 = vrot.slane %v1571, 4
        %v1577 = vsel %vm819, %v1576, %v1559
        %v1578 = vrot.slane %v1559, 4
        %v1579 = vsel %vm819, %v1571, %v1578
        %1581 = vrot.lane.b32.xlu0 %v1575, 8
        %v1582 = vpop.permute.xlu0 %1581
        %1585 = vrot.lane.b32.xlu0 %v1577, 16
        %v1586 = vpop.permute.xlu0 %1585
        %1589 = vrot.lane.b32.xlu0 %v1579, 24
        %v1590 = vpop.permute.xlu0 %1589
        %v1592 = vsel %vm1169, %v1573, %v1582
        %vm1593 = vcmask 130048
        %v1594 = vsel %vm1593, %v1592, %v1586
        %vm1595 = vcmask 195584
        %v1596 = vsel %vm1595, %v1594, %v1590
        %v1597 = vld [vmem:[#allocation8] sm:$0xff]
        %v1598 = vld [vmem:[#allocation8 + $0x8] sm:$0xff]
        %v1599 = vld [vmem:[#allocation8 + $0x10] sm:$0xff]
        %v1600 = vld [vmem:[#allocation8 + $0x18] sm:$0xff]
        %v1601 = vld [vmem:[%s11] sm:$0x1]
        %v1603 = vperm.slane %v1601, 0
        %v1606 = vsel %vm680, %v1596, 0
        %1608 = vmatpush.msra.mxu0 0.0
        %1609 = vmatpush.msra.mxu0 0.0
        %1610 = vmatpush.msra.mxu0 0.0
        %1611 = vmatpush.msra.mxu0 0.0
        %1612 = vmatpush.msra.mxu0 0.0
        %1613 = vmatpush.msra.mxu0 0.0
        %1614 = vmatpush.msra.mxu0 0.0
        %1615 = vmatpush.msra.mxu0 0.0
        %1616 = vmatpush.msra.mxu0 0.0
        %1617 = vmatpush.msra.mxu0 0.0
        %1618 = vmatpush.msra.mxu0 0.0
        %1619 = vmatpush.msra.mxu0 0.0
        %1620 = vmatpush.msra.mxu0 %v1600
        %1621 = vmatpush.msra.mxu0 %v1599
        %1622 = vmatpush.msra.mxu0 %v1598
        %1623 = vmatpush.msra.mxu0 %v1597
        %1624 = vmatmul.f32.gmra.mxu0 %v1606
        %v1625 = vpop.f32.mrf.mxu0
        %v1626 = vadd.f32 %v1603, %v1625
        %1627 = vdwg.mxu0
        %v1628 = vadd.f32 %v679, %v1626
        %v1629 = vsel %vm680, %v1628, 0.0
        %1630 = vadd.xlane.f32.xlu0 %v1629
        %v1631 = vpop.xlane.xlu0 %1630
        %v1632 = vmul.f32 %v1631, %v690
        %v1633 = vsub.f32 %v1628, %v1632
        %v1634 = vmul.f32 %v1633, %v1633
        %v1635 = vsel %vm680, %v1634, 0.0
        %1636 = vadd.xlane.f32.xlu0 %v1635
        %v1637 = vpop.xlane.xlu0 %1636
        %v1638 = vmul.f32 %v1637, %v690
        %v1639 = vadd.f32 %v1638, 1e-05
        %v1640 = vrsqrt.pop %v1639
        %v1641 = vmul.f32 %v1640, %v1639
        %v1642 = vmul.f32 %v1641, %v1640
        %v1643 = vmul.f32 0.5, %v1642
        %v1644 = vsub.f32 1.5, %v1643
        %v1645 = vmul.f32 %v1640, %v1644
        %vm1646 = vweird.f32 %v1639
        %vm1647 = vweird.f32 %v1640
        %vm1648 = vmor %vm1646, %vm1647
        %v1649 = vsel %vm1648, %v1640, %v1645
        %v1650 = vmul.f32 %v1633, %v1649
        %v1651 = vld [vmem:[%s12] sm:$0x1]
        %v1653 = vperm.slane %v1651, 0
        %v1655 = vmul.f32 %v1650, %v1653
        %v1656 = vld [vmem:[%s13] sm:$0x1]
        %v1658 = vperm.slane %v1656, 0
        %v1660 = vadd.f32 %v1655, %v1658
        %v1661 = vld [vmem:[#allocation10] sm:$0xff]
        %v1662 = vld [vmem:[#allocation10 + $0x8] sm:$0xff]
        %v1663 = vld [vmem:[#allocation10 + $0x10] sm:$0xff]
        %v1664 = vld [vmem:[#allocation10 + $0x18] sm:$0xff]
        %v1665 = vld [vmem:[%s15] sm:$0x1]
        %v1667 = vperm.slane %v1665, 0
        %v1670 = vsel %vm680, %v1660, 0
        %1672 = vmatpush.msra.mxu0 0.0
        %1673 = vmatpush.msra.mxu0 0.0
        %1674 = vmatpush.msra.mxu0 0.0
        %1675 = vmatpush.msra.mxu0 0.0
        %1676 = vmatpush.msra.mxu0 0.0
        %1677 = vmatpush.msra.mxu0 0.0
        %1678 = vmatpush.msra.mxu0 0.0
        %1679 = vmatpush.msra.mxu0 0.0
        %1680 = vmatpush.msra.mxu0 0.0
        %1681 = vmatpush.msra.mxu0 0.0
        %1682 = vmatpush.msra.mxu0 0.0
        %1683 = vmatpush.msra.mxu0 0.0
        %1684 = vmatpush.msra.mxu0 %v1664
        %1685 = vmatpush.msra.mxu0 %v1663
        %1686 = vmatpush.msra.mxu0 %v1662
        %1687 = vmatpush.msra.mxu0 %v1661
        %1688 = vmatmul.f32.gmra.mxu0 %v1670
        %v1689 = vpop.f32.mrf.mxu0
        %v1690 = vadd.f32 %v1667, %v1689
        %1691 = vdwg.mxu0
        %v1692 = vmax.f32 %v1690, 0.0
        %v1693 = vld [vmem:[%s16] sm:$0xff]
        %v1694 = vld [vmem:[%s16 + $0x8] sm:$0xff]
        %v1695 = vld [vmem:[%s16 + $0x10] sm:$0xff]
        %v1696 = vld [vmem:[%s16 + $0x18] sm:$0xff]
        %v1697 = vld [vmem:[%s16 + $0x20] sm:$0xff]
        %v1698 = vld [vmem:[%s16 + $0x28] sm:$0xff]
        %v1699 = vld [vmem:[%s16 + $0x30] sm:$0xff]
        %v1700 = vld [vmem:[%s16 + $0x38] sm:$0xff]
        %v1701 = vld [vmem:[%s17] sm:$0x1]
        %v1703 = vperm.slane %v1701, 0
        %vm1705 = vcmask 523264
        %v1707 = vsel %vm1705, %v1692, 0
        %1709 = vmatpush.msra.mxu0 0.0
        %1710 = vmatpush.msra.mxu0 0.0
        %1711 = vmatpush.msra.mxu0 0.0
        %1712 = vmatpush.msra.mxu0 0.0
        %1713 = vmatpush.msra.mxu0 0.0
        %1714 = vmatpush.msra.mxu0 0.0
        %1715 = vmatpush.msra.mxu0 0.0
        %1716 = vmatpush.msra.mxu0 0.0
        %1717 = vmatpush.msra.mxu0 %v1700
        %1718 = vmatpush.msra.mxu0 %v1699
        %1719 = vmatpush.msra.mxu0 %v1698
        %1720 = vmatpush.msra.mxu0 %v1697
        %1721 = vmatpush.msra.mxu0 %v1696
        %1722 = vmatpush.msra.mxu0 %v1695
        %1723 = vmatpush.msra.mxu0 %v1694
        %1724 = vmatpush.msra.mxu0 %v1693
        %1725 = vmatmul.f32.gmra.mxu0 %v1707
        %v1726 = vpop.f32.mrf.mxu0
        %v1727 = vadd.f32 %v1703, %v1726
        %1728 = vdwg.mxu0
        %v1729 = vadd.f32 %v1628, %v1727
        %1730 = vst.msk [vmem:[%s678] sm:$0xff] %vm680, %v1729
        %s1731 = sand.u32 %s435, 1
        %s1732 = scalar_lea.sflag [#allocation4], %s1731
        %s1733 = sand.u32 %s435, 1
        %s1734 = smul.addr %s1733, 8
        %s1735 = scalar_lea.vmem [#allocation11], %s1734
        // Predicated region
        $region113: #{tpu_custom_call.1} parent=91 // pred_check
          %p1736 = pneg %p445
        $region114: #{tpu_custom_call.1} parent=91 // pred_check_branch
          %1738 = sbr.rel (%p1736) target = $region116
        $region115: #{tpu_custom_call.1} parent=91 // pred_region
          %1740 = vsyncadd %s1732, 0
          %s1741 = smul.addr %s39, 8
          %s1742 = scalar_lea.hbm %s18, %s1741
          %s1744 = sshll.u32 %s1735, 4
          %s1745 = int_to_ptr.vmem [resolvable:$true] %s1744
          %s1746 = sshll.u32 %s1742, 4
          %s1747 = int_to_ptr.hbm [resolvable:$true] %s1746
          %1749 = dma.vmem_to_hbm [thread:$0]  %s1745, 128, %s1747, %s1732
        $region116: #{tpu_custom_call.1} parent=91 // pred_fallthru
          _
      $region92: #{tpu_custom_call.1} parent=5 // pred_fallthru
        _
      %p1750 = scmp.le.s32.totalorder 2, %s34
      // Predicated region
      $region117: #{tpu_custom_call.1} parent=5 // pred_check
        %p1751 = pneg %p1750
      $region118: #{tpu_custom_call.1} parent=5 // pred_check_branch
        %1753 = sbr.rel (%p1751) target = $region120
      $region119: #{tpu_custom_call.1} parent=5 // pred_region
        %s1754 = ssub.s32 %s34, 2
        // Predicated region
        $region121: #{tpu_custom_call.1} parent=119 // pred_check
          %p1755 = pneg %p451
        $region122: #{tpu_custom_call.1} parent=119 // pred_check_branch
          %1757 = sbr.rel (%p1755) target = $region124
        $region123: #{tpu_custom_call.1} parent=119 // pred_region
          %s1758 = sand.u32 %s436, 1
          %s1759 = scalar_lea.sflag [#allocation4], %s1758
          %s1760 = sand.u32 %s436, 1
          %s1761 = smul.addr %s1760, 8
          %s1762 = scalar_lea.vmem [#allocation11], %s1761
          %1764 = dma.done %s1759, 128
        $region124: #{tpu_custom_call.1} parent=119 // pred_fallthru
          _
      $region120: #{tpu_custom_call.1} parent=5 // pred_fallthru
        _
    $region6: #{tpu_custom_call.1} parent=1 // loop_footer
      %s38 = sadd.s32 1, %s34
    $region7: #{tpu_custom_call.1} parent=1 // loop_footer_branch
      %33 = sbr.rel target = $region3
    $region8: #{tpu_custom_call.1} parent=1 // loop_exit
      _
    %1765 = vsyncpa [#allocation3], 1
    %s1766 = scalar_lea.sflag [#allocation3], 1
    %1767 = vsyncpa %s1766, 1
    %1768 = vsyncpa [#allocation6], 1
    %s1769 = scalar_lea.sflag [#allocation6], 1
    %1770 = vsyncpa %s1769, 1
    %1771 = vsyncpa [#allocation9], 1
    %1772 = vsyncpa [#allocation4], 1
    %s1773 = scalar_lea.sflag [#allocation4], 1
    %1774 = vsyncpa %s1773, 1

</llo_original>
